<compile_context>
chip_gen: v7x
topology: tpu7x:2x2x1
jax: 0.10.0
libtpu: 0.0.40
codegen_flags: <defaults>
</compile_context>

<pallas_src>
import functools

import jax
import jax.numpy as jnp
from jax.experimental import pallas as pl
from jax.experimental.pallas import tpu as pltpu


def spe_attention_kernel(x_ref, gamma_ref, beta_ref, wq_ref, wk_ref, wv_ref,
                         wo_ref, bout_ref, o_ref, attn_out_ref,
                         *, batch_block, seq_len, heads, dim_head, eps):
    M, D = x_ref.shape                        # M = batch_block * seq_len
    inner = heads * dim_head

    # ---- LayerNorm (f32, VPU) ----
    x = x_ref[...]                                            # (M, D) f32
    mean = jnp.mean(x, axis=-1, keepdims=True)
    xc = x - mean
    var = jnp.mean(xc * xc, axis=-1, keepdims=True)
    y = xc * jax.lax.rsqrt(var + eps) * gamma_ref[...] + beta_ref[...]   # (1, D) broadcasts
    yb = y.astype(jnp.bfloat16)

    # ---- fused projections: lane-dense (M, D) x (D, inner) matmuls, f32 accumulation ----
    # scale (dim_head ** -0.5) is already folded into wq in the wrapper.
    q = jnp.dot(yb, wq_ref[...], preferred_element_type=jnp.float32)     # (M, inner)
    k = jnp.dot(yb, wk_ref[...], preferred_element_type=jnp.float32)
    v = jnp.dot(yb, wv_ref[...], preferred_element_type=jnp.float32)

    qb = q.astype(jnp.bfloat16).reshape(batch_block, seq_len, inner)
    kb = k.astype(jnp.bfloat16).reshape(batch_block, seq_len, inner)
    vb = v.astype(jnp.bfloat16).reshape(batch_block, seq_len, inner)

    # ---- per-head attention (static unroll over the small head count) ----
    # TODO(synk): for long sequences this should become a flash-style online-softmax loop
    # tiled over the key/value axis instead of materializing (batch_block, N, N) scores.
    for h in range(heads):
        lo = h * dim_head
        hi = lo + dim_head
        qh = qb[:, :, lo:hi]                                  # (Bt, N, Dh) bf16
        kh = kb[:, :, lo:hi]
        vh = vb[:, :, lo:hi]

        dots = jnp.einsum('bqd,bkd->bqk', qh, kh,
                          preferred_element_type=jnp.float32)  # (Bt, N, N) f32
        dots = dots - jnp.max(dots, axis=-1, keepdims=True)
        e = jnp.exp(dots)
        attn = e * pl.reciprocal(jnp.sum(e, axis=-1, keepdims=True), approx=True)

        oh = jnp.einsum('bqk,bkd->bqd', attn.astype(jnp.bfloat16), vh,
                        preferred_element_type=jnp.float32)    # (Bt, N, Dh) f32
        attn_out_ref[:, lo:hi] = oh.reshape(M, dim_head).astype(jnp.bfloat16)

    # ---- single output projection with K = inner, bias added here ----
    o = jnp.dot(attn_out_ref[...], wo_ref[...], preferred_element_type=jnp.float32)  # (M, D)
    o_ref[...] = (o + bout_ref[...]).astype(o_ref.dtype)


def _vmem_bytes_estimate(batch_block, seq_len, dim, inner):
    """Rough per-grid-step VMEM working-set estimate (bytes)."""
    M = batch_block * seq_len
    io = 2 * (M * dim * 4) * 2                         # x in + out blocks, double-buffered f32
    weights = 2 * (3 * dim * inner + inner * dim) * 2  # bf16 weights, double-buffered
    ln = M * dim * (4 + 2)                             # layernorm f32 + bf16 copy
    qkv = 3 * M * inner * (4 + 2)                      # q/k/v f32 + bf16 copies
    scores = 3 * batch_block * seq_len * seq_len * 4   # dots / e / attn (reused per head)
    attn_out = M * inner * 2                           # bf16 scratch
    return io + weights + ln + qkv + scores + attn_out


def spe_attention(x, gamma, beta, w_qkv, w_out, b_out, *, heads, dim_head,
                  eps=1e-5, batch_block=None):
    B, N, D = x.shape
    inner = heads * dim_head
    assert w_qkv.shape == (D, 3 * inner)
    assert w_out.shape == (inner, D)
    # TODO(synk): general (non multiple-of-8) sequence lengths need padding in the wrapper;
    # the flattened (batch*seq, D) layout requires an 8-aligned sublane split in-kernel.
    assert N % 8 == 0, "seq_len must be a multiple of 8"

    scale = dim_head ** (-0.5)

    # Choose batch_block: largest divisor of B that fits the VMEM budget and (when B >= 2)
    # leaves at least 2 batch-grid steps so v7x megacore can shard the parallel axis.
    budget = 40 * 1024 * 1024
    if batch_block is None:
        batch_block = 1
        for d in sorted((d for d in range(1, B + 1) if B % d == 0), reverse=True):
            if B >= 2 and B // d < 2:
                continue
            if _vmem_bytes_estimate(d, N, D, inner) <= budget:
                batch_block = d
                break
    assert B % batch_block == 0
    M_blk = batch_block * N

    est = _vmem_bytes_estimate(batch_block, N, D, inner)
    vmem_limit = int(min(64 * 1024 * 1024, max(32 * 1024 * 1024, 2 * est)))

    # Weight preparation: fold the softmax scale into W_q (before the bf16 cast), bf16 MXU
    # operands everywhere.
    w_q = (w_qkv[:, 0 * inner:1 * inner] * scale).astype(jnp.bfloat16)   # (D, inner)
    w_k = w_qkv[:, 1 * inner:2 * inner].astype(jnp.bfloat16)
    w_v = w_qkv[:, 2 * inner:3 * inner].astype(jnp.bfloat16)
    w_o = w_out.astype(jnp.bfloat16)                                     # (inner, D)

    x_flat = x.reshape(B * N, D).astype(jnp.float32)
    gamma2 = gamma.reshape(1, D).astype(jnp.float32)
    beta2 = beta.reshape(1, D).astype(jnp.float32)
    bout2 = b_out.reshape(1, D).astype(jnp.float32)

    kernel = functools.partial(spe_attention_kernel, batch_block=batch_block,
                               seq_len=N, heads=heads, dim_head=dim_head, eps=eps)

    flops = (2 * B * N * D * 3 * inner            # qkv projections
             + 2 * B * heads * N * N * dim_head   # scores
             + 2 * B * heads * N * N * dim_head   # attn @ v
             + 2 * B * N * inner * D)             # output projection
    transcendentals = B * heads * N * N           # exp
    bytes_accessed = (4 * B * N * D * 2                     # x in + out
                      + 2 * (D * 3 * inner + inner * D)     # bf16 weights
                      + 4 * 3 * D)                          # gamma / beta / bias

    out_flat = pl.pallas_call(
        kernel,
        out_shape=jax.ShapeDtypeStruct((B * N, D), x.dtype),
        grid_spec=pltpu.PrefetchScalarGridSpec(
            num_scalar_prefetch=0,
            grid=(B // batch_block,),
            in_specs=[
                pl.BlockSpec((M_blk, D), lambda b: (b, 0)),       # x (flattened batch*seq)
                pl.BlockSpec((1, D), lambda b: (0, 0)),           # gamma
                pl.BlockSpec((1, D), lambda b: (0, 0)),           # beta
                pl.BlockSpec((D, inner), lambda b: (0, 0)),       # w_q (scale folded in)
                pl.BlockSpec((D, inner), lambda b: (0, 0)),       # w_k
                pl.BlockSpec((D, inner), lambda b: (0, 0)),       # w_v
                pl.BlockSpec((inner, D), lambda b: (0, 0)),       # w_out
                pl.BlockSpec((1, D), lambda b: (0, 0)),           # b_out
            ],
            out_specs=pl.BlockSpec((M_blk, D), lambda b: (b, 0)),
            scratch_shapes=[
                pltpu.VMEM((M_blk, inner), jnp.bfloat16),         # per-head attention outputs
            ],
        ),
        compiler_params=pltpu.CompilerParams(
            dimension_semantics=("parallel",),
            vmem_limit_bytes=vmem_limit,
        ),
        cost_estimate=pl.CostEstimate(flops=flops, transcendentals=transcendentals,
                                      bytes_accessed=bytes_accessed),
    )(x_flat, gamma2, beta2, w_q, w_k, w_v, w_o, bout2)

    return out_flat.reshape(B, N, D)


def spe_attention_ref(x, gamma, beta, w_qkv, w_out, b_out, *, heads, dim_head, eps=1e-5):
    # Pure-JAX f32 reference for verification.
    mean = jnp.mean(x, axis=-1, keepdims=True)
    var = jnp.mean((x - mean) ** 2, axis=-1, keepdims=True)
    y = (x - mean) / jnp.sqrt(var + eps) * gamma + beta
    qkv = y @ w_qkv
    inner = heads * dim_head
    q, k, v = qkv[..., :inner], qkv[..., inner:2 * inner], qkv[..., 2 * inner:]

    def split_heads(t):
        B, N, _ = t.shape
        return t.reshape(B, N, heads, dim_head).transpose(0, 2, 1, 3)   # (B, H, N, Dh)

    q, k, v = map(split_heads, (q, k, v))
    dots = jnp.einsum("bhnd,bhmd->bhnm", q, k) * (dim_head ** -0.5)
    attn = jax.nn.softmax(dots, axis=-1)
    out = jnp.einsum("bhnm,bhmd->bhnd", attn, v)
    out = out.transpose(0, 2, 1, 3).reshape(x.shape[0], x.shape[1], inner)
    return out @ w_out + b_out


if __name__ == "__main__":
    B, N, D = 2, 8, 32          # batch, tokens, dim
    heads, dim_head = 4, 16     # inner_dim = 64
    inner = heads * dim_head

    key = jax.random.PRNGKey(0)
    kx, kq, ko, kb, kg = jax.random.split(key, 5)

    x = jax.random.normal(kx, (B, N, D), dtype=jnp.float32)
    gamma = jnp.ones((1, D), dtype=jnp.float32) + 0.05 * jax.random.normal(kg, (1, D))
    beta = jnp.zeros((1, D), dtype=jnp.float32)
    w_qkv = 0.05 * jax.random.normal(kq, (D, 3 * inner), dtype=jnp.float32)
    w_out = 0.05 * jax.random.normal(ko, (inner, D), dtype=jnp.float32)
    b_out = 0.01 * jax.random.normal(kb, (1, D), dtype=jnp.float32)

    out = spe_attention(x, gamma, beta, w_qkv, w_out, b_out, heads=heads, dim_head=dim_head)
    out = jax.block_until_ready(out)

    ref = spe_attention_ref(x, gamma[0], beta[0], w_qkv, w_out, b_out[0],
                            heads=heads, dim_head=dim_head)
    assert out.shape == (B, N, D)
    # bf16 MXU operands (f32 accumulation) + approx-reciprocal softmax -> bf16-level tolerance
    # against the f32 reference.
    assert jnp.allclose(out, ref, atol=2e-2, rtol=2e-2), "mismatch vs pure-JAX reference"

    print("KERNEL_OK")
</pallas_src>

<mosaic_0001>
module attributes {stable_mosaic.version = 11 : i64} {
  func.func @spe_attention_kernel(%arg0: i32, %arg1: memref<8x32xf32, #tpu.memory_space<vmem>>, %arg2: memref<1x32xf32, #tpu.memory_space<vmem>>, %arg3: memref<1x32xf32, #tpu.memory_space<vmem>>, %arg4: memref<32x64xbf16, #tpu.memory_space<vmem>>, %arg5: memref<32x64xbf16, #tpu.memory_space<vmem>>, %arg6: memref<32x64xbf16, #tpu.memory_space<vmem>>, %arg7: memref<64x32xbf16, #tpu.memory_space<vmem>>, %arg8: memref<1x32xf32, #tpu.memory_space<vmem>>, %arg9: memref<8x32xf32, #tpu.memory_space<vmem>>, %arg10: memref<8x64xbf16, #tpu.memory_space<vmem>>) attributes {dimension_semantics = [#tpu.dimension_semantics<parallel>], iteration_bounds = array<i64: 2>, scalar_prefetch = 0 : i64, scratch_operands = 1 : i64, tpu.core_type = #tpu.core_type<tc>, window_params = [{transform_indices = @transform_0, window_bounds = array<i64: 8, 32>}, {pipeline_mode = #tpu.pipeline_mode<synchronous>, transform_indices = @transform_1, window_bounds = array<i64: 1, 32>}, {pipeline_mode = #tpu.pipeline_mode<synchronous>, transform_indices = @transform_2, window_bounds = array<i64: 1, 32>}, {pipeline_mode = #tpu.pipeline_mode<synchronous>, transform_indices = @transform_3, window_bounds = array<i64: 32, 64>}, {pipeline_mode = #tpu.pipeline_mode<synchronous>, transform_indices = @transform_4, window_bounds = array<i64: 32, 64>}, {pipeline_mode = #tpu.pipeline_mode<synchronous>, transform_indices = @transform_5, window_bounds = array<i64: 32, 64>}, {pipeline_mode = #tpu.pipeline_mode<synchronous>, transform_indices = @transform_6, window_bounds = array<i64: 64, 32>}, {pipeline_mode = #tpu.pipeline_mode<synchronous>, transform_indices = @transform_7, window_bounds = array<i64: 1, 32>}, {transform_indices = @transform_8, window_bounds = array<i64: 8, 32>}]} {
    %c0 = arith.constant 0 : index
    %c0_0 = arith.constant 0 : index
    %0 = vector.load %arg1[%c0, %c0_0] : memref<8x32xf32, #tpu.memory_space<vmem>>, vector<8x32xf32>
    %cst = arith.constant dense<0.000000e+00> : vector<8xf32>
    %1 = vector.multi_reduction <add>, %0, %cst [1] : vector<8x32xf32> to vector<8xf32>
    %2 = vector.shape_cast %1 : vector<8xf32> to vector<8x1xf32>
    %cst_1 = arith.constant 3.200000e+01 : f32
    %3 = vector.broadcast %cst_1 : f32 to vector<8x1xf32>
    %4 = arith.divf %2, %3 : vector<8x1xf32>
    %5 = vector.broadcast %4 : vector<8x1xf32> to vector<8x32xf32>
    %6 = arith.subf %0, %5 : vector<8x32xf32>
    %7 = arith.mulf %6, %6 : vector<8x32xf32>
    %cst_2 = arith.constant dense<0.000000e+00> : vector<8xf32>
    %8 = vector.multi_reduction <add>, %7, %cst_2 [1] : vector<8x32xf32> to vector<8xf32>
    %9 = vector.shape_cast %8 : vector<8xf32> to vector<8x1xf32>
    %cst_3 = arith.constant 3.200000e+01 : f32
    %10 = vector.broadcast %cst_3 : f32 to vector<8x1xf32>
    %11 = arith.divf %9, %10 : vector<8x1xf32>
    %cst_4 = arith.constant 9.99999974E-6 : f32
    %12 = vector.broadcast %cst_4 : f32 to vector<8x1xf32>
    %13 = arith.addf %11, %12 : vector<8x1xf32>
    %14 = math.rsqrt %13 : vector<8x1xf32>
    %15 = vector.broadcast %14 : vector<8x1xf32> to vector<8x32xf32>
    %16 = arith.mulf %6, %15 : vector<8x32xf32>
    %c0_5 = arith.constant 0 : index
    %c0_6 = arith.constant 0 : index
    %17 = vector.load %arg2[%c0_5, %c0_6] : memref<1x32xf32, #tpu.memory_space<vmem>>, vector<1x32xf32>
    %18 = vector.broadcast %17 : vector<1x32xf32> to vector<8x32xf32>
    %19 = arith.mulf %16, %18 : vector<8x32xf32>
    %c0_7 = arith.constant 0 : index
    %c0_8 = arith.constant 0 : index
    %20 = vector.load %arg3[%c0_7, %c0_8] : memref<1x32xf32, #tpu.memory_space<vmem>>, vector<1x32xf32>
    %21 = vector.broadcast %20 : vector<1x32xf32> to vector<8x32xf32>
    %22 = arith.addf %19, %21 : vector<8x32xf32>
    %23 = arith.truncf %22 : vector<8x32xf32> to vector<8x32xbf16>
    %c0_9 = arith.constant 0 : index
    %c0_10 = arith.constant 0 : index
    %24 = vector.load %arg4[%c0_9, %c0_10] : memref<32x64xbf16, #tpu.memory_space<vmem>>, vector<32x64xbf16>
    %cst_11 = arith.constant dense<0.000000e+00> : vector<8x64xf32>
    %25 = tpu.matmul %23, %24, %cst_11 {dimension_numbers = #tpu.dot_dimension_numbers<[1], [0], [0], [1], [0, 0, 1, 1], [], []>} : vector<8x32xbf16>, vector<32x64xbf16>, vector<8x64xf32> -> vector<8x64xf32>
    %c0_12 = arith.constant 0 : index
    %c0_13 = arith.constant 0 : index
    %26 = vector.load %arg5[%c0_12, %c0_13] : memref<32x64xbf16, #tpu.memory_space<vmem>>, vector<32x64xbf16>
    %cst_14 = arith.constant dense<0.000000e+00> : vector<8x64xf32>
    %27 = tpu.matmul %23, %26, %cst_14 {dimension_numbers = #tpu.dot_dimension_numbers<[1], [0], [0], [1], [0, 0, 1, 1], [], []>} : vector<8x32xbf16>, vector<32x64xbf16>, vector<8x64xf32> -> vector<8x64xf32>
    %c0_15 = arith.constant 0 : index
    %c0_16 = arith.constant 0 : index
    %28 = vector.load %arg6[%c0_15, %c0_16] : memref<32x64xbf16, #tpu.memory_space<vmem>>, vector<32x64xbf16>
    %cst_17 = arith.constant dense<0.000000e+00> : vector<8x64xf32>
    %29 = tpu.matmul %23, %28, %cst_17 {dimension_numbers = #tpu.dot_dimension_numbers<[1], [0], [0], [1], [0, 0, 1, 1], [], []>} : vector<8x32xbf16>, vector<32x64xbf16>, vector<8x64xf32> -> vector<8x64xf32>
    %30 = arith.truncf %25 : vector<8x64xf32> to vector<8x64xbf16>
    %31 = vector.shape_cast %30 : vector<8x64xbf16> to vector<1x8x64xbf16>
    %32 = arith.truncf %27 : vector<8x64xf32> to vector<8x64xbf16>
    %33 = vector.shape_cast %32 : vector<8x64xbf16> to vector<1x8x64xbf16>
    %34 = arith.truncf %29 : vector<8x64xf32> to vector<8x64xbf16>
    %35 = vector.shape_cast %34 : vector<8x64xbf16> to vector<1x8x64xbf16>
    %36 = vector.extract_strided_slice %31 {offsets = [0, 0, 0], sizes = [1, 8, 16], strides = [1, 1, 1]} : vector<1x8x64xbf16> to vector<1x8x16xbf16>
    %37 = vector.extract_strided_slice %33 {offsets = [0, 0, 0], sizes = [1, 8, 16], strides = [1, 1, 1]} : vector<1x8x64xbf16> to vector<1x8x16xbf16>
    %38 = vector.extract_strided_slice %35 {offsets = [0, 0, 0], sizes = [1, 8, 16], strides = [1, 1, 1]} : vector<1x8x64xbf16> to vector<1x8x16xbf16>
    "tpu.trace_start"() <{level = 10 : i32, message = "bqd,bkd->bqk"}> : () -> ()
    %cst_18 = arith.constant dense<0.000000e+00> : vector<1x8x8xf32>
    %39 = tpu.matmul %36, %37, %cst_18 {dimension_numbers = #tpu.dot_dimension_numbers<[2], [2], [1], [1], [0, 0, 0, 1, 1, 1], [0], [0]>} : vector<1x8x16xbf16>, vector<1x8x16xbf16>, vector<1x8x8xf32> -> vector<1x8x8xf32>
    "tpu.trace_stop"() : () -> ()
    %cst_19 = arith.constant dense<0xFF800000> : vector<1x8xf32>
    %40 = vector.multi_reduction <maximumf>, %39, %cst_19 [2] : vector<1x8x8xf32> to vector<1x8xf32>
    %41 = vector.shape_cast %40 : vector<1x8xf32> to vector<1x8x1xf32>
    %42 = vector.broadcast %41 : vector<1x8x1xf32> to vector<1x8x8xf32>
    %43 = arith.subf %39, %42 : vector<1x8x8xf32>
    %44 = math.exp %43 : vector<1x8x8xf32>
    %cst_20 = arith.constant dense<0.000000e+00> : vector<1x8xf32>
    %45 = vector.multi_reduction <add>, %44, %cst_20 [2] : vector<1x8x8xf32> to vector<1x8xf32>
    %46 = vector.shape_cast %45 : vector<1x8xf32> to vector<1x8x1xf32>
    %47 = tpu.reciprocal %46 {approx = true} : vector<1x8x1xf32> -> vector<1x8x1xf32>
    %48 = vector.broadcast %47 : vector<1x8x1xf32> to vector<1x8x8xf32>
    %49 = arith.mulf %44, %48 : vector<1x8x8xf32>
    %50 = arith.truncf %49 : vector<1x8x8xf32> to vector<1x8x8xbf16>
    "tpu.trace_start"() <{level = 10 : i32, message = "bqk,bkd->bqd"}> : () -> ()
    %cst_21 = arith.constant dense<0.000000e+00> : vector<1x8x16xf32>
    %51 = tpu.matmul %50, %38, %cst_21 {dimension_numbers = #tpu.dot_dimension_numbers<[2], [1], [1], [2], [0, 0, 0, 1, 1, 2], [0], [0]>} : vector<1x8x8xbf16>, vector<1x8x16xbf16>, vector<1x8x16xf32> -> vector<1x8x16xf32>
    "tpu.trace_stop"() : () -> ()
    %52 = vector.shape_cast %51 : vector<1x8x16xf32> to vector<8x16xf32>
    %53 = arith.truncf %52 : vector<8x16xf32> to vector<8x16xbf16>
    %c0_22 = arith.constant 0 : index
    %c0_23 = arith.constant 0 : index
    %54 = vector.load %arg10[%c0_22, %c0_23] : memref<8x64xbf16, #tpu.memory_space<vmem>>, vector<8x16xbf16>
    tpu.vector_store %arg10[%c0_22, %c0_23], %53 {strides = array<i32>} : memref<8x64xbf16, #tpu.memory_space<vmem>>, vector<8x16xbf16>,
    %55 = vector.extract_strided_slice %31 {offsets = [0, 0, 16], sizes = [1, 8, 16], strides = [1, 1, 1]} : vector<1x8x64xbf16> to vector<1x8x16xbf16>
    %56 = vector.extract_strided_slice %33 {offsets = [0, 0, 16], sizes = [1, 8, 16], strides = [1, 1, 1]} : vector<1x8x64xbf16> to vector<1x8x16xbf16>
    %57 = vector.extract_strided_slice %35 {offsets = [0, 0, 16], sizes = [1, 8, 16], strides = [1, 1, 1]} : vector<1x8x64xbf16> to vector<1x8x16xbf16>
    "tpu.trace_start"() <{level = 10 : i32, message = "bqd,bkd->bqk"}> : () -> ()
    %cst_24 = arith.constant dense<0.000000e+00> : vector<1x8x8xf32>
    %58 = tpu.matmul %55, %56, %cst_24 {dimension_numbers = #tpu.dot_dimension_numbers<[2], [2], [1], [1], [0, 0, 0, 1, 1, 1], [0], [0]>} : vector<1x8x16xbf16>, vector<1x8x16xbf16>, vector<1x8x8xf32> -> vector<1x8x8xf32>
    "tpu.trace_stop"() : () -> ()
    %cst_25 = arith.constant dense<0xFF800000> : vector<1x8xf32>
    %59 = vector.multi_reduction <maximumf>, %58, %cst_25 [2] : vector<1x8x8xf32> to vector<1x8xf32>
    %60 = vector.shape_cast %59 : vector<1x8xf32> to vector<1x8x1xf32>
    %61 = vector.broadcast %60 : vector<1x8x1xf32> to vector<1x8x8xf32>
    %62 = arith.subf %58, %61 : vector<1x8x8xf32>
    %63 = math.exp %62 : vector<1x8x8xf32>
    %cst_26 = arith.constant dense<0.000000e+00> : vector<1x8xf32>
    %64 = vector.multi_reduction <add>, %63, %cst_26 [2] : vector<1x8x8xf32> to vector<1x8xf32>
    %65 = vector.shape_cast %64 : vector<1x8xf32> to vector<1x8x1xf32>
    %66 = tpu.reciprocal %65 {approx = true} : vector<1x8x1xf32> -> vector<1x8x1xf32>
    %67 = vector.broadcast %66 : vector<1x8x1xf32> to vector<1x8x8xf32>
    %68 = arith.mulf %63, %67 : vector<1x8x8xf32>
    %69 = arith.truncf %68 : vector<1x8x8xf32> to vector<1x8x8xbf16>
    "tpu.trace_start"() <{level = 10 : i32, message = "bqk,bkd->bqd"}> : () -> ()
    %cst_27 = arith.constant dense<0.000000e+00> : vector<1x8x16xf32>
    %70 = tpu.matmul %69, %57, %cst_27 {dimension_numbers = #tpu.dot_dimension_numbers<[2], [1], [1], [2], [0, 0, 0, 1, 1, 2], [0], [0]>} : vector<1x8x8xbf16>, vector<1x8x16xbf16>, vector<1x8x16xf32> -> vector<1x8x16xf32>
    "tpu.trace_stop"() : () -> ()
    %71 = vector.shape_cast %70 : vector<1x8x16xf32> to vector<8x16xf32>
    %72 = arith.truncf %71 : vector<8x16xf32> to vector<8x16xbf16>
    %c0_28 = arith.constant 0 : index
    %c16 = arith.constant 16 : index
    %73 = vector.load %arg10[%c0_28, %c16] : memref<8x64xbf16, #tpu.memory_space<vmem>>, vector<8x16xbf16>
    tpu.vector_store %arg10[%c0_28, %c16], %72 {strides = array<i32>} : memref<8x64xbf16, #tpu.memory_space<vmem>>, vector<8x16xbf16>,
    %74 = vector.extract_strided_slice %31 {offsets = [0, 0, 32], sizes = [1, 8, 16], strides = [1, 1, 1]} : vector<1x8x64xbf16> to vector<1x8x16xbf16>
    %75 = vector.extract_strided_slice %33 {offsets = [0, 0, 32], sizes = [1, 8, 16], strides = [1, 1, 1]} : vector<1x8x64xbf16> to vector<1x8x16xbf16>
    %76 = vector.extract_strided_slice %35 {offsets = [0, 0, 32], sizes = [1, 8, 16], strides = [1, 1, 1]} : vector<1x8x64xbf16> to vector<1x8x16xbf16>
    "tpu.trace_start"() <{level = 10 : i32, message = "bqd,bkd->bqk"}> : () -> ()
    %cst_29 = arith.constant dense<0.000000e+00> : vector<1x8x8xf32>
    %77 = tpu.matmul %74, %75, %cst_29 {dimension_numbers = #tpu.dot_dimension_numbers<[2], [2], [1], [1], [0, 0, 0, 1, 1, 1], [0], [0]>} : vector<1x8x16xbf16>, vector<1x8x16xbf16>, vector<1x8x8xf32> -> vector<1x8x8xf32>
    "tpu.trace_stop"() : () -> ()
    %cst_30 = arith.constant dense<0xFF800000> : vector<1x8xf32>
    %78 = vector.multi_reduction <maximumf>, %77, %cst_30 [2] : vector<1x8x8xf32> to vector<1x8xf32>
    %79 = vector.shape_cast %78 : vector<1x8xf32> to vector<1x8x1xf32>
    %80 = vector.broadcast %79 : vector<1x8x1xf32> to vector<1x8x8xf32>
    %81 = arith.subf %77, %80 : vector<1x8x8xf32>
    %82 = math.exp %81 : vector<1x8x8xf32>
    %cst_31 = arith.constant dense<0.000000e+00> : vector<1x8xf32>
    %83 = vector.multi_reduction <add>, %82, %cst_31 [2] : vector<1x8x8xf32> to vector<1x8xf32>
    %84 = vector.shape_cast %83 : vector<1x8xf32> to vector<1x8x1xf32>
    %85 = tpu.reciprocal %84 {approx = true} : vector<1x8x1xf32> -> vector<1x8x1xf32>
    %86 = vector.broadcast %85 : vector<1x8x1xf32> to vector<1x8x8xf32>
    %87 = arith.mulf %82, %86 : vector<1x8x8xf32>
    %88 = arith.truncf %87 : vector<1x8x8xf32> to vector<1x8x8xbf16>
    "tpu.trace_start"() <{level = 10 : i32, message = "bqk,bkd->bqd"}> : () -> ()
    %cst_32 = arith.constant dense<0.000000e+00> : vector<1x8x16xf32>
    %89 = tpu.matmul %88, %76, %cst_32 {dimension_numbers = #tpu.dot_dimension_numbers<[2], [1], [1], [2], [0, 0, 0, 1, 1, 2], [0], [0]>} : vector<1x8x8xbf16>, vector<1x8x16xbf16>, vector<1x8x16xf32> -> vector<1x8x16xf32>
    "tpu.trace_stop"() : () -> ()
    %90 = vector.shape_cast %89 : vector<1x8x16xf32> to vector<8x16xf32>
    %91 = arith.truncf %90 : vector<8x16xf32> to vector<8x16xbf16>
    %c0_33 = arith.constant 0 : index
    %c32 = arith.constant 32 : index
    %92 = vector.load %arg10[%c0_33, %c32] : memref<8x64xbf16, #tpu.memory_space<vmem>>, vector<8x16xbf16>
    tpu.vector_store %arg10[%c0_33, %c32], %91 {strides = array<i32>} : memref<8x64xbf16, #tpu.memory_space<vmem>>, vector<8x16xbf16>,
    %93 = vector.extract_strided_slice %31 {offsets = [0, 0, 48], sizes = [1, 8, 16], strides = [1, 1, 1]} : vector<1x8x64xbf16> to vector<1x8x16xbf16>
    %94 = vector.extract_strided_slice %33 {offsets = [0, 0, 48], sizes = [1, 8, 16], strides = [1, 1, 1]} : vector<1x8x64xbf16> to vector<1x8x16xbf16>
    %95 = vector.extract_strided_slice %35 {offsets = [0, 0, 48], sizes = [1, 8, 16], strides = [1, 1, 1]} : vector<1x8x64xbf16> to vector<1x8x16xbf16>
    "tpu.trace_start"() <{level = 10 : i32, message = "bqd,bkd->bqk"}> : () -> ()
    %cst_34 = arith.constant dense<0.000000e+00> : vector<1x8x8xf32>
    %96 = tpu.matmul %93, %94, %cst_34 {dimension_numbers = #tpu.dot_dimension_numbers<[2], [2], [1], [1], [0, 0, 0, 1, 1, 1], [0], [0]>} : vector<1x8x16xbf16>, vector<1x8x16xbf16>, vector<1x8x8xf32> -> vector<1x8x8xf32>
    "tpu.trace_stop"() : () -> ()
    %cst_35 = arith.constant dense<0xFF800000> : vector<1x8xf32>
    %97 = vector.multi_reduction <maximumf>, %96, %cst_35 [2] : vector<1x8x8xf32> to vector<1x8xf32>
    %98 = vector.shape_cast %97 : vector<1x8xf32> to vector<1x8x1xf32>
    %99 = vector.broadcast %98 : vector<1x8x1xf32> to vector<1x8x8xf32>
    %100 = arith.subf %96, %99 : vector<1x8x8xf32>
    %101 = math.exp %100 : vector<1x8x8xf32>
    %cst_36 = arith.constant dense<0.000000e+00> : vector<1x8xf32>
    %102 = vector.multi_reduction <add>, %101, %cst_36 [2] : vector<1x8x8xf32> to vector<1x8xf32>
    %103 = vector.shape_cast %102 : vector<1x8xf32> to vector<1x8x1xf32>
    %104 = tpu.reciprocal %103 {approx = true} : vector<1x8x1xf32> -> vector<1x8x1xf32>
    %105 = vector.broadcast %104 : vector<1x8x1xf32> to vector<1x8x8xf32>
    %106 = arith.mulf %101, %105 : vector<1x8x8xf32>
    %107 = arith.truncf %106 : vector<1x8x8xf32> to vector<1x8x8xbf16>
    "tpu.trace_start"() <{level = 10 : i32, message = "bqk,bkd->bqd"}> : () -> ()
    %cst_37 = arith.constant dense<0.000000e+00> : vector<1x8x16xf32>
    %108 = tpu.matmul %107, %95, %cst_37 {dimension_numbers = #tpu.dot_dimension_numbers<[2], [1], [1], [2], [0, 0, 0, 1, 1, 2], [0], [0]>} : vector<1x8x8xbf16>, vector<1x8x16xbf16>, vector<1x8x16xf32> -> vector<1x8x16xf32>
    "tpu.trace_stop"() : () -> ()
    %109 = vector.shape_cast %108 : vector<1x8x16xf32> to vector<8x16xf32>
    %110 = arith.truncf %109 : vector<8x16xf32> to vector<8x16xbf16>
    %c0_38 = arith.constant 0 : index
    %c48 = arith.constant 48 : index
    %111 = vector.load %arg10[%c0_38, %c48] : memref<8x64xbf16, #tpu.memory_space<vmem>>, vector<8x16xbf16>
    tpu.vector_store %arg10[%c0_38, %c48], %110 {strides = array<i32>} : memref<8x64xbf16, #tpu.memory_space<vmem>>, vector<8x16xbf16>,
    %c0_39 = arith.constant 0 : index
    %c0_40 = arith.constant 0 : index
    %112 = vector.load %arg10[%c0_39, %c0_40] : memref<8x64xbf16, #tpu.memory_space<vmem>>, vector<8x64xbf16>
    %c0_41 = arith.constant 0 : index
    %c0_42 = arith.constant 0 : index
    %113 = vector.load %arg7[%c0_41, %c0_42] : memref<64x32xbf16, #tpu.memory_space<vmem>>, vector<64x32xbf16>
    %cst_43 = arith.constant dense<0.000000e+00> : vector<8x32xf32>
    %114 = tpu.matmul %112, %113, %cst_43 {dimension_numbers = #tpu.dot_dimension_numbers<[1], [0], [0], [1], [0, 0, 1, 1], [], []>} : vector<8x64xbf16>, vector<64x32xbf16>, vector<8x32xf32> -> vector<8x32xf32>
    %c0_44 = arith.constant 0 : index
    %c0_45 = arith.constant 0 : index
    %115 = vector.load %arg8[%c0_44, %c0_45] : memref<1x32xf32, #tpu.memory_space<vmem>>, vector<1x32xf32>
    %116 = vector.broadcast %115 : vector<1x32xf32> to vector<8x32xf32>
    %117 = arith.addf %114, %116 : vector<8x32xf32>
    %c0_46 = arith.constant 0 : index
    %c0_47 = arith.constant 0 : index
    %118 = vector.load %arg9[%c0_46, %c0_47] : memref<8x32xf32, #tpu.memory_space<vmem>>, vector<8x32xf32>
    tpu.vector_store %arg9[%c0_46, %c0_47], %117 {strides = array<i32>} : memref<8x32xf32, #tpu.memory_space<vmem>>, vector<8x32xf32>,
    return
  }
  func.func @transform_0(%arg0: i32) -> (i32, i32) {
    %c0_i32 = arith.constant 0 : i32
    %c0_i32_0 = arith.constant 0 : i32
    return %arg0, %c0_i32 : i32, i32
  }
  func.func @transform_1(%arg0: i32) -> (i32, i32) {
    %c0_i32 = arith.constant 0 : i32
    %c0_i32_0 = arith.constant 0 : i32
    %c0_i32_1 = arith.constant 0 : i32
    return %c0_i32, %c0_i32_0 : i32, i32
  }
  func.func @transform_2(%arg0: i32) -> (i32, i32) {
    %c0_i32 = arith.constant 0 : i32
    %c0_i32_0 = arith.constant 0 : i32
    %c0_i32_1 = arith.constant 0 : i32
    return %c0_i32, %c0_i32_0 : i32, i32
  }
  func.func @transform_3(%arg0: i32) -> (i32, i32) {
    %c0_i32 = arith.constant 0 : i32
    %c0_i32_0 = arith.constant 0 : i32
    %c0_i32_1 = arith.constant 0 : i32
    return %c0_i32, %c0_i32_0 : i32, i32
  }
  func.func @transform_4(%arg0: i32) -> (i32, i32) {
    %c0_i32 = arith.constant 0 : i32
    %c0_i32_0 = arith.constant 0 : i32
    %c0_i32_1 = arith.constant 0 : i32
    return %c0_i32, %c0_i32_0 : i32, i32
  }
  func.func @transform_5(%arg0: i32) -> (i32, i32) {
    %c0_i32 = arith.constant 0 : i32
    %c0_i32_0 = arith.constant 0 : i32
    %c0_i32_1 = arith.constant 0 : i32
    return %c0_i32, %c0_i32_0 : i32, i32
  }
  func.func @transform_6(%arg0: i32) -> (i32, i32) {
    %c0_i32 = arith.constant 0 : i32
    %c0_i32_0 = arith.constant 0 : i32
    %c0_i32_1 = arith.constant 0 : i32
    return %c0_i32, %c0_i32_0 : i32, i32
  }
  func.func @transform_7(%arg0: i32) -> (i32, i32) {
    %c0_i32 = arith.constant 0 : i32
    %c0_i32_0 = arith.constant 0 : i32
    %c0_i32_1 = arith.constant 0 : i32
    return %c0_i32, %c0_i32_0 : i32, i32
  }
  func.func @transform_8(%arg0: i32) -> (i32, i32) {
    %c0_i32 = arith.constant 0 : i32
    %c0_i32_0 = arith.constant 0 : i32
    return %arg0, %c0_i32 : i32, i32
  }
}

</mosaic_0001>

<llo_original>
// kernel: tpu_custom_call.1
$region0: #{tpu_custom_call.1}
  #allocation0 [shape = 'u32[]', space=smem, size = 0x4, offset = 0x4, fixed_abs, tag = 'smem constant byte address 0x4 - core index']
  #allocation1 [shape = 'u32[144,128]{1,0:T(1,128)}', space=vmem, size = 0x12000, scoped, tag = 'internal scratch']
  #allocation2 [shape = 'bf16[8,64]{1,0:T(8,128)(2,1)}', space=vmem, size = 0x800, scoped, tag = 'scratch operand']
  %s0 = inlined_call_operand.vmem [shape: f32[16,32], index: 0, kind: input, shape index: {}]
  %s1 = inlined_call_operand.vmem [shape: f32[1,32], index: 1, kind: input, shape index: {}]
  %s2 = inlined_call_operand.vmem [shape: f32[1,32], index: 2, kind: input, shape index: {}]
  %s3 = inlined_call_operand.vmem [shape: bf16[32,64], index: 3, kind: input, shape index: {}]
  %s4 = inlined_call_operand.vmem [shape: bf16[32,64], index: 4, kind: input, shape index: {}]
  %s5 = inlined_call_operand.hbm [shape: bf16[32,64], index: 5, kind: input, shape index: {}]
  %s6 = inlined_call_operand.vmem [shape: bf16[64,32], index: 6, kind: input, shape index: {}]
  %s7 = inlined_call_operand.vmem [shape: f32[1,32], index: 7, kind: input, shape index: {}]
  %s8 = inlined_call_operand.hbm [shape: f32[16,32], index: 8, kind: output, shape index: {}]
  %s9 = sld [smem:[#allocation0]]
  $region69: #{tpu_custom_call.1} parent=0
    _
  %s11 = ssub.s32 1, %s9
  %s12 = scalar_select 0, %s11, %s9
  $region1: #{tpu_custom_call.1} parent=0
    #allocation3 [shape = 'u8[8192]{0}', space=vmem, size = 0x2000, scoped, tag = 'input window, operand 5, single buffered']
    #allocation4 [shape = 's32[2]{0}', space=sflag, size = 0x8, scoped, tag = 'scoped memory for tpu_custom_call.1']
    #allocation5 [shape = 's32[2]{0}', space=sflag, size = 0x8, scoped, tag = 'scoped memory for tpu_custom_call.1']
    #allocation6 [shape = 'u8[8192]{0}', space=vmem, size = 0x2000, scoped, tag = 'output window, operand 0']
    %13 = vsyncpa [#allocation4], 0
    %14 = vsyncpa [#allocation5], 0
    %s15 = scalar_lea.sflag [#allocation5], 1
    %16 = vsyncpa %s15, 0
    loop: start=0, step=1, limit=4
    $region2: #{tpu_custom_call.1} parent=1 // loop_pre_header
      _
    $region3: #{tpu_custom_call.1} parent=1 // loop_header
      %s18 = sphi 0, %s22
      %p19 = scmp.ge.s32.totalorder %s18, 4
      %s28 = sphi 0, %s30
      %s31 = sphi 0, %s28
      %s32 = sphi 0, %s31
      %s48 = sphi 0, %s32
      %s52 = sphi 0, %s52
      %s54 = sphi 0, %s52
      %s55 = sphi 0, %s54
      %s69 = sphi 0, %s55
      %s73 = sphi 0, %s73
      %s75 = sphi 0, %s73
      %s76 = sphi 0, %s75
      %s90 = sphi 0, %s76
      %s94 = sphi 0, %s94
      %s96 = sphi 0, %s94
      %s97 = sphi 0, %s96
      %s111 = sphi 0, %s97
      %s115 = sphi 0, %s115
      %s117 = sphi 0, %s115
      %s118 = sphi 0, %s117
      %s132 = sphi 0, %s118
      %s136 = sphi 0, %s136
      %s138 = sphi 0, %s136
      %s139 = sphi 0, %s138
      %s153 = sphi 0, %s139
      %s157 = sphi 0, %s157
      %s159 = sphi 0, %s157
      %s160 = sphi 0, %s159
      %s174 = sphi 0, %s160
      %s178 = sphi 0, %s178
      %s180 = sphi 0, %s178
      %s181 = sphi 0, %s180
      %s195 = sphi 0, %s181
      %s201 = sphi 0, %s203
      %s204 = sphi 0, %s201
      %s205 = sphi 0, %s204
      %s221 = sphi 0, %s205
    $region4: #{tpu_custom_call.1} parent=1 // loop_header_branch
      %21 = sbr.rel (%p19) target = $region8
    $region5: #{tpu_custom_call.1} parent=1 // loop_body
      %s23 = ssub.s32 %s18, 1
      %s24 = ssub.s32 %s18, 2
      %s25 = sadd.s32 %s18, 1
      %s26 = ssub.s32 %s18, %s25
      %p27 = scmp.eq.s32.totalorder %s26, 0
      %s29 = sadd.s32 %s28, 1
      %s30 = scalar_select %p27, %s28, %s29
      %p33 = pneg %p27
      %p34 = scmp.eq.s32.totalorder %s18, 1
      %p35 = por %p33, %p34
      %p36 = scmp.ne.s32.totalorder %s28, %s31
      %p37 = scmp.eq.s32.totalorder %s18, 0
      %p38 = por %p36, %p37
      %p39 = scmp.ne.s32.totalorder %s28, %s31
      %p40 = scmp.eq.s32.totalorder %s23, 1
      %p41 = por %p39, %p40
      %p42 = scmp.ne.s32.totalorder %s31, %s32
      %p43 = scmp.eq.s32.totalorder %s23, 0
      %p44 = por %p42, %p43
      %p45 = scmp.ne.s32.totalorder %s31, %s32
      %p46 = scmp.eq.s32.totalorder %s24, 1
      %p47 = por %p45, %p46
      %p49 = scmp.ne.s32.totalorder %s32, %s48
      %p50 = scmp.eq.s32.totalorder %s24, 0
      %p51 = por %p49, %p50
      %s53 = sadd.s32 %s52, 1
      %p56 = scmp.eq.s32.totalorder %s18, 1
      %p57 = scmp.ne.s32.totalorder %s52, %s54
      %p58 = scmp.eq.s32.totalorder %s18, 0
      %p59 = por %p57, %p58
      %p60 = scmp.ne.s32.totalorder %s52, %s54
      %p61 = scmp.eq.s32.totalorder %s23, 1
      %p62 = por %p60, %p61
      %p63 = scmp.ne.s32.totalorder %s54, %s55
      %p64 = scmp.eq.s32.totalorder %s23, 0
      %p65 = por %p63, %p64
      %p66 = scmp.ne.s32.totalorder %s54, %s55
      %p67 = scmp.eq.s32.totalorder %s24, 1
      %p68 = por %p66, %p67
      %p70 = scmp.ne.s32.totalorder %s55, %s69
      %p71 = scmp.eq.s32.totalorder %s24, 0
      %p72 = por %p70, %p71
      %s74 = sadd.s32 %s73, 1
      %p77 = scmp.eq.s32.totalorder %s18, 1
      %p78 = scmp.ne.s32.totalorder %s73, %s75
      %p79 = scmp.eq.s32.totalorder %s18, 0
      %p80 = por %p78, %p79
      %p81 = scmp.ne.s32.totalorder %s73, %s75
      %p82 = scmp.eq.s32.totalorder %s23, 1
      %p83 = por %p81, %p82
      %p84 = scmp.ne.s32.totalorder %s75, %s76
      %p85 = scmp.eq.s32.totalorder %s23, 0
      %p86 = por %p84, %p85
      %p87 = scmp.ne.s32.totalorder %s75, %s76
      %p88 = scmp.eq.s32.totalorder %s24, 1
      %p89 = por %p87, %p88
      %p91 = scmp.ne.s32.totalorder %s76, %s90
      %p92 = scmp.eq.s32.totalorder %s24, 0
      %p93 = por %p91, %p92
      %s95 = sadd.s32 %s94, 1
      %p98 = scmp.eq.s32.totalorder %s18, 1
      %p99 = scmp.ne.s32.totalorder %s94, %s96
      %p100 = scmp.eq.s32.totalorder %s18, 0
      %p101 = por %p99, %p100
      %p102 = scmp.ne.s32.totalorder %s94, %s96
      %p103 = scmp.eq.s32.totalorder %s23, 1
      %p104 = por %p102, %p103
      %p105 = scmp.ne.s32.totalorder %s96, %s97
      %p106 = scmp.eq.s32.totalorder %s23, 0
      %p107 = por %p105, %p106
      %p108 = scmp.ne.s32.totalorder %s96, %s97
      %p109 = scmp.eq.s32.totalorder %s24, 1
      %p110 = por %p108, %p109
      %p112 = scmp.ne.s32.totalorder %s97, %s111
      %p113 = scmp.eq.s32.totalorder %s24, 0
      %p114 = por %p112, %p113
      %s116 = sadd.s32 %s115, 1
      %p119 = scmp.eq.s32.totalorder %s18, 1
      %p120 = scmp.ne.s32.totalorder %s115, %s117
      %p121 = scmp.eq.s32.totalorder %s18, 0
      %p122 = por %p120, %p121
      %p123 = scmp.ne.s32.totalorder %s115, %s117
      %p124 = scmp.eq.s32.totalorder %s23, 1
      %p125 = por %p123, %p124
      %p126 = scmp.ne.s32.totalorder %s117, %s118
      %p127 = scmp.eq.s32.totalorder %s23, 0
      %p128 = por %p126, %p127
      %p129 = scmp.ne.s32.totalorder %s117, %s118
      %p130 = scmp.eq.s32.totalorder %s24, 1
      %p131 = por %p129, %p130
      %p133 = scmp.ne.s32.totalorder %s118, %s132
      %p134 = scmp.eq.s32.totalorder %s24, 0
      %p135 = por %p133, %p134
      %s137 = sadd.s32 %s136, 1
      %p140 = scmp.eq.s32.totalorder %s18, 1
      %p141 = scmp.ne.s32.totalorder %s136, %s138
      %p142 = scmp.eq.s32.totalorder %s18, 0
      %p143 = por %p141, %p142
      %p144 = scmp.ne.s32.totalorder %s136, %s138
      %p145 = scmp.eq.s32.totalorder %s23, 1
      %p146 = por %p144, %p145
      %p147 = scmp.ne.s32.totalorder %s138, %s139
      %p148 = scmp.eq.s32.totalorder %s23, 0
      %p149 = por %p147, %p148
      %p150 = scmp.ne.s32.totalorder %s138, %s139
      %p151 = scmp.eq.s32.totalorder %s24, 1
      %p152 = por %p150, %p151
      %p154 = scmp.ne.s32.totalorder %s139, %s153
      %p155 = scmp.eq.s32.totalorder %s24, 0
      %p156 = por %p154, %p155
      %s158 = sadd.s32 %s157, 1
      %p161 = scmp.eq.s32.totalorder %s18, 1
      %p162 = scmp.ne.s32.totalorder %s157, %s159
      %p163 = scmp.eq.s32.totalorder %s18, 0
      %p164 = por %p162, %p163
      %p165 = scmp.ne.s32.totalorder %s157, %s159
      %p166 = scmp.eq.s32.totalorder %s23, 1
      %p167 = por %p165, %p166
      %p168 = scmp.ne.s32.totalorder %s159, %s160
      %p169 = scmp.eq.s32.totalorder %s23, 0
      %p170 = por %p168, %p169
      %p171 = scmp.ne.s32.totalorder %s159, %s160
      %p172 = scmp.eq.s32.totalorder %s24, 1
      %p173 = por %p171, %p172
      %p175 = scmp.ne.s32.totalorder %s160, %s174
      %p176 = scmp.eq.s32.totalorder %s24, 0
      %p177 = por %p175, %p176
      %s179 = sadd.s32 %s178, 1
      %p182 = scmp.eq.s32.totalorder %s18, 1
      %p183 = scmp.ne.s32.totalorder %s178, %s180
      %p184 = scmp.eq.s32.totalorder %s18, 0
      %p185 = por %p183, %p184
      %p186 = scmp.ne.s32.totalorder %s178, %s180
      %p187 = scmp.eq.s32.totalorder %s23, 1
      %p188 = por %p186, %p187
      %p189 = scmp.ne.s32.totalorder %s180, %s181
      %p190 = scmp.eq.s32.totalorder %s23, 0
      %p191 = por %p189, %p190
      %p192 = scmp.ne.s32.totalorder %s180, %s181
      %p193 = scmp.eq.s32.totalorder %s24, 1
      %p194 = por %p192, %p193
      %p196 = scmp.ne.s32.totalorder %s181, %s195
      %p197 = scmp.eq.s32.totalorder %s24, 0
      %p198 = por %p196, %p197
      %s199 = ssub.s32 %s18, %s25
      %p200 = scmp.eq.s32.totalorder %s199, 0
      %s202 = sadd.s32 %s201, 1
      %s203 = scalar_select %p200, %s201, %s202
      %p206 = pneg %p200
      %p207 = scmp.eq.s32.totalorder %s18, 1
      %p208 = por %p206, %p207
      %p209 = scmp.ne.s32.totalorder %s201, %s204
      %p210 = scmp.eq.s32.totalorder %s18, 0
      %p211 = por %p209, %p210
      %p212 = scmp.ne.s32.totalorder %s201, %s204
      %p213 = scmp.eq.s32.totalorder %s23, 1
      %p214 = por %p212, %p213
      %p215 = scmp.ne.s32.totalorder %s204, %s205
      %p216 = scmp.eq.s32.totalorder %s23, 0
      %p217 = por %p215, %p216
      %p218 = scmp.ne.s32.totalorder %s204, %s205
      %p219 = scmp.eq.s32.totalorder %s24, 1
      %p220 = por %p218, %p219
      %p222 = scmp.ne.s32.totalorder %s205, %s221
      %p223 = scmp.eq.s32.totalorder %s24, 0
      %p224 = por %p222, %p223
      %p225 = scmp.le.s32.totalorder 1, %s18
      %p226 = scmp.lt.s32.totalorder %s18, 3
      %p227 = pnand %p225, %p226
      %p228 = pneg %p227
      // Predicated region
      $region9: #{tpu_custom_call.1} parent=5 // pred_check
        _
      $region10: #{tpu_custom_call.1} parent=5 // pred_check_branch
        %230 = sbr.rel (%p227) target = $region12
      $region11: #{tpu_custom_call.1} parent=5 // pred_region
        %s231 = ssub.s32 %s18, 1
        // Predicated region
        $region13: #{tpu_custom_call.1} parent=11 // pred_check
          %p232 = pneg %p65
        $region14: #{tpu_custom_call.1} parent=11 // pred_check_branch
          %234 = sbr.rel (%p232) target = $region16
        $region15: #{tpu_custom_call.1} parent=11 // pred_region
          _
        $region16: #{tpu_custom_call.1} parent=11 // pred_fallthru
          _
        // Predicated region
        $region17: #{tpu_custom_call.1} parent=11 // pred_check
          %p235 = pneg %p86
        $region18: #{tpu_custom_call.1} parent=11 // pred_check_branch
          %237 = sbr.rel (%p235) target = $region20
        $region19: #{tpu_custom_call.1} parent=11 // pred_region
          _
        $region20: #{tpu_custom_call.1} parent=11 // pred_fallthru
          _
        // Predicated region
        $region21: #{tpu_custom_call.1} parent=11 // pred_check
          %p238 = pneg %p107
        $region22: #{tpu_custom_call.1} parent=11 // pred_check_branch
          %240 = sbr.rel (%p238) target = $region24
        $region23: #{tpu_custom_call.1} parent=11 // pred_region
          _
        $region24: #{tpu_custom_call.1} parent=11 // pred_fallthru
          _
        // Predicated region
        $region25: #{tpu_custom_call.1} parent=11 // pred_check
          %p241 = pneg %p128
        $region26: #{tpu_custom_call.1} parent=11 // pred_check_branch
          %243 = sbr.rel (%p241) target = $region28
        $region27: #{tpu_custom_call.1} parent=11 // pred_region
          _
        $region28: #{tpu_custom_call.1} parent=11 // pred_fallthru
          _
        // Predicated region
        $region29: #{tpu_custom_call.1} parent=11 // pred_check
          %p244 = pneg %p149
        $region30: #{tpu_custom_call.1} parent=11 // pred_check_branch
          %246 = sbr.rel (%p244) target = $region32
        $region31: #{tpu_custom_call.1} parent=11 // pred_region
          %s248 = ssub.s32 256, 256
          %249 = vsyncadd [#allocation4], %s248
          %s250 = sshll.u32 [#allocation3], 4
          %s251 = int_to_ptr.vmem [resolvable:$true] %s250
          %256 = dma.hbm_to_vmem [thread:$0]  %s5, 256, %s251, [#allocation4], 64, 64, 4
        $region32: #{tpu_custom_call.1} parent=11 // pred_fallthru
          _
        // Predicated region
        $region33: #{tpu_custom_call.1} parent=11 // pred_check
          %p257 = pneg %p170
        $region34: #{tpu_custom_call.1} parent=11 // pred_check_branch
          %259 = sbr.rel (%p257) target = $region36
        $region35: #{tpu_custom_call.1} parent=11 // pred_region
          _
        $region36: #{tpu_custom_call.1} parent=11 // pred_fallthru
          _
        // Predicated region
        $region37: #{tpu_custom_call.1} parent=11 // pred_check
          %p260 = pneg %p191
        $region38: #{tpu_custom_call.1} parent=11 // pred_check_branch
          %262 = sbr.rel (%p260) target = $region40
        $region39: #{tpu_custom_call.1} parent=11 // pred_region
          _
        $region40: #{tpu_custom_call.1} parent=11 // pred_fallthru
          _
      $region12: #{tpu_custom_call.1} parent=5 // pred_fallthru
        _
      %p263 = scmp.lt.s32.totalorder %s18, 2
      // Predicated region
      $region41: #{tpu_custom_call.1} parent=5 // pred_check
        %p264 = pneg %p263
      $region42: #{tpu_custom_call.1} parent=5 // pred_check_branch
        %266 = sbr.rel (%p264) target = $region44
      $region43: #{tpu_custom_call.1} parent=5 // pred_region
        // Predicated region
        $region45: #{tpu_custom_call.1} parent=43 // pred_check
          %p267 = pneg %p38
        $region46: #{tpu_custom_call.1} parent=43 // pred_check_branch
          %269 = sbr.rel (%p267) target = $region48
        $region47: #{tpu_custom_call.1} parent=43 // pred_region
          %p270 = scmp.lt.s32.totalorder %s18, 1
          %s271 = scalar_select %p270, %s18, 1
          %s272 = smul.addr %s271, 8
          %s273 = scalar_lea.vmem %s0, %s272
        $region48: #{tpu_custom_call.1} parent=43 // pred_fallthru
          _
      $region44: #{tpu_custom_call.1} parent=5 // pred_fallthru
        _
      %p274 = scmp.le.s32.totalorder 1, %s18
      %p275 = scmp.lt.s32.totalorder %s18, 3
      %p276 = pnand %p274, %p275
      %p277 = pneg %p276
      // Predicated region
      $region49: #{tpu_custom_call.1} parent=5 // pred_check
        _
      $region50: #{tpu_custom_call.1} parent=5 // pred_check_branch
        %279 = sbr.rel (%p276) target = $region52
      $region51: #{tpu_custom_call.1} parent=5 // pred_region
        %s280 = ssub.s32 %s18, 1
        // Predicated region
        $region53: #{tpu_custom_call.1} parent=51 // pred_check
          %p281 = pneg %p149
        $region54: #{tpu_custom_call.1} parent=51 // pred_check_branch
          %283 = sbr.rel (%p281) target = $region56
        $region55: #{tpu_custom_call.1} parent=51 // pred_region
          %284 = dma.done [#allocation4], 256
        $region56: #{tpu_custom_call.1} parent=51 // pred_fallthru
          _
        %p285 = scmp.lt.s32.totalorder %s23, 1
        %s286 = scalar_select %p285, %s23, 1
        %s287 = smul.addr %s286, 8
        %s288 = scalar_lea.vmem %s0, %s287
        %p289 = pneg %p44
        %p290 = pneg %p41
        %p291 = pneg %p65
        %p292 = pneg %p62
        %p293 = pneg %p86
        %p294 = pneg %p83
        %p295 = pneg %p107
        %p296 = pneg %p104
        %p297 = pneg %p128
        %p298 = pneg %p125
        %p299 = pneg %p149
        %p300 = pneg %p146
        %p301 = pneg %p170
        %p302 = pneg %p167
        %p303 = pneg %p191
        %p304 = pneg %p188
        %p305 = pneg %p217
        %p306 = pneg %p214
        %s307 = sand.u32 %s204, 1
        %s308 = scalar_lea.sflag [#allocation5], %s307
        %s309 = sand.u32 %s204, 1
        %s310 = smul.addr %s309, 8
        %s311 = scalar_lea.vmem [#allocation6], %s310
        %p312 = scmp.lt.s32.totalorder %s23, 1
        %s313 = scalar_select %p312, %s23, 1
        %s314 = smul.addr %s313, 8
        %s315 = scalar_lea.vmem %s0, %s314
        %v317 = vld [vmem:[%s315] sm:$0xff]
        %vm318 = vcmask 261120
        %v319 = vsel %vm318, %v317, 0.0
        %320 = vadd.xlane.f32.xlu0 %v319
        %v321 = vpop.xlane.xlu0 %320
        %v322 = vrcp.pop 32.0
        %v323 = vmul.f32 %v321, %v322
        %v324 = vsub.f32 %v317, %v323
        %v325 = vmul.f32 %v324, %v324
        %v326 = vsel %vm318, %v325, 0.0
        %327 = vadd.xlane.f32.xlu0 %v326
        %v328 = vpop.xlane.xlu0 %327
        %v329 = vmul.f32 %v328, %v322
        %v330 = vadd.f32 %v329, 1e-05
        %v331 = vrsqrt.pop %v330
        %v332 = vmul.f32 %v324, %v331
        %v333 = vld [vmem:[%s1] sm:$0x1]
        %v335 = vlaneseq
        %v336 = vshrl.u32 %v335, 7
        %v337 = vsub.s32 0, %v336
        %v338 = vrot.slane %v333, %v337
        %v340 = vmul.f32 %v332, %v338
        %v341 = vld [vmem:[%s2] sm:$0x1]
        %v343 = vlaneseq
        %v344 = vshrl.u32 %v343, 7
        %v345 = vsub.s32 0, %v344
        %v346 = vrot.slane %v341, %v345
        %v348 = vadd.f32 %v340, %v346
        %v349 = vpack.c.bf16 %v348, %v348
        %v350 = vld [vmem:[%s3] sm:$0xf]
        %v351 = vld [vmem:[%s3 + $0x4] sm:$0xf]
        %v352 = vld [vmem:[%s3 + $0x8] sm:$0xf]
        %v353 = vld [vmem:[%s3 + $0xc] sm:$0xf]
        %v358 = vunpack.c.l.b16 %v350
        %v359 = vunpack.c.l.b16 %v351
        %v360 = vunpack.c.l.b16 %v352
        %v361 = vunpack.c.l.b16 %v353
        %v362 = vpack.c.b16 %v359, %v358
        %v363 = vpack.c.b16 %v361, %v360
        %v367 = vsel %vm318, %v349, 0
        %369 = vmatprep.subr.bf16.mxu0 0
        %370 = vmatpush1.bf16.msra.mxu0 %v362
        %371 = vmatprep.subr.bf16.mxu0 0
        %372 = vmatpush1.bf16.msra.mxu0 %v363
        %373 = vmatprep.subr.bf16.mxu0 0
        %374 = vmatpush1.bf16.msra.mxu0 0
        %375 = vmatprep.subr.bf16.mxu0 0
        %376 = vmatpush1.bf16.msra.mxu0 0
        %377 = vmatprep.subr.bf16.mxu0 0
        %378 = vmatpush1.bf16.msra.mxu0 0
        %379 = vmatprep.subr.bf16.mxu0 0
        %380 = vmatpush1.bf16.msra.mxu0 0
        %381 = vmatprep.subr.bf16.mxu0 0
        %382 = vmatpush1.bf16.msra.mxu0 0
        %383 = vmatprep.subr.bf16.mxu0 0
        %384 = vmatpush1.bf16.msra.mxu0 0
        %385 = vmatprep.subr.bf16.mxu0 0
        %386 = vmatpush1.bf16.msra.mxu0 0
        %387 = vmatprep.subr.bf16.mxu0 0
        %388 = vmatpush1.bf16.msra.mxu0 0
        %389 = vmatprep.subr.bf16.mxu0 0
        %390 = vmatpush1.bf16.msra.mxu0 0
        %391 = vmatprep.subr.bf16.mxu0 0
        %392 = vmatpush1.bf16.msra.mxu0 0
        %393 = vmatprep.subr.bf16.mxu0 0
        %394 = vmatpush1.bf16.msra.mxu0 0
        %395 = vmatprep.subr.bf16.mxu0 0
        %396 = vmatpush1.bf16.msra.mxu0 0
        %397 = vmatprep.subr.bf16.mxu0 0
        %398 = vmatpush1.bf16.msra.mxu0 0
        %399 = vmatprep.subr.bf16.mxu0 0
        %400 = vmatpush1.bf16.msra.mxu0 0
        %401 = vmatprep.mubr.bf16.mxu0 0
        %402 = vmatmul.mubr.bf16.gmra.mrb[0].mxu0 %v367
        %v403 = vpop.f32.mrb[0].mxu0
        %v404 = vadd.f32 0.0, %v403
        %v405 = vpop.f32.mrb[0].mxu0
        %v406 = vpop.f32.mrb[0].mxu0
        %v407 = vpop.f32.mrb[0].mxu0
        %408 = vdwg.mxu0
        %v409 = vld [vmem:[%s4] sm:$0xf]
        %v410 = vld [vmem:[%s4 + $0x4] sm:$0xf]
        %v411 = vld [vmem:[%s4 + $0x8] sm:$0xf]
        %v412 = vld [vmem:[%s4 + $0xc] sm:$0xf]
        %v417 = vunpack.c.l.b16 %v409
        %v418 = vunpack.c.l.b16 %v410
        %v419 = vunpack.c.l.b16 %v411
        %v420 = vunpack.c.l.b16 %v412
        %v421 = vpack.c.b16 %v418, %v417
        %v422 = vpack.c.b16 %v420, %v419
        %425 = vmatprep.subr.bf16.mxu0 0
        %426 = vmatpush1.bf16.msra.mxu0 %v421
        %427 = vmatprep.subr.bf16.mxu0 0
        %428 = vmatpush1.bf16.msra.mxu0 %v422
        %429 = vmatprep.subr.bf16.mxu0 0
        %430 = vmatpush1.bf16.msra.mxu0 0
        %431 = vmatprep.subr.bf16.mxu0 0
        %432 = vmatpush1.bf16.msra.mxu0 0
        %433 = vmatprep.subr.bf16.mxu0 0
        %434 = vmatpush1.bf16.msra.mxu0 0
        %435 = vmatprep.subr.bf16.mxu0 0
        %436 = vmatpush1.bf16.msra.mxu0 0
        %437 = vmatprep.subr.bf16.mxu0 0
        %438 = vmatpush1.bf16.msra.mxu0 0
        %439 = vmatprep.subr.bf16.mxu0 0
        %440 = vmatpush1.bf16.msra.mxu0 0
        %441 = vmatprep.subr.bf16.mxu0 0
        %442 = vmatpush1.bf16.msra.mxu0 0
        %443 = vmatprep.subr.bf16.mxu0 0
        %444 = vmatpush1.bf16.msra.mxu0 0
        %445 = vmatprep.subr.bf16.mxu0 0
        %446 = vmatpush1.bf16.msra.mxu0 0
        %447 = vmatprep.subr.bf16.mxu0 0
        %448 = vmatpush1.bf16.msra.mxu0 0
        %449 = vmatprep.subr.bf16.mxu0 0
        %450 = vmatpush1.bf16.msra.mxu0 0
        %451 = vmatprep.subr.bf16.mxu0 0
        %452 = vmatpush1.bf16.msra.mxu0 0
        %453 = vmatprep.subr.bf16.mxu0 0
        %454 = vmatpush1.bf16.msra.mxu0 0
        %455 = vmatprep.subr.bf16.mxu0 0
        %456 = vmatpush1.bf16.msra.mxu0 0
        %457 = vmatprep.mubr.bf16.mxu0 0
        %458 = vmatmul.mubr.bf16.gmra.mrb[0].mxu0 %v367
        %v459 = vpop.f32.mrb[0].mxu0
        %v460 = vadd.f32 0.0, %v459
        %v461 = vpop.f32.mrb[0].mxu0
        %v462 = vpop.f32.mrb[0].mxu0
        %v463 = vpop.f32.mrb[0].mxu0
        %464 = vdwg.mxu0
        %v465 = vld [vmem:[#allocation3] sm:$0xf]
        %v466 = vld [vmem:[#allocation3 + $0x4] sm:$0xf]
        %v467 = vld [vmem:[#allocation3 + $0x8] sm:$0xf]
        %v468 = vld [vmem:[#allocation3 + $0xc] sm:$0xf]
        %v473 = vunpack.c.l.b16 %v465
        %v474 = vunpack.c.l.b16 %v466
        %v475 = vunpack.c.l.b16 %v467
        %v476 = vunpack.c.l.b16 %v468
        %v477 = vpack.c.b16 %v474, %v473
        %v478 = vpack.c.b16 %v476, %v475
        %481 = vmatprep.subr.bf16.mxu0 0
        %482 = vmatpush1.bf16.msra.mxu0 %v477
        %483 = vmatprep.subr.bf16.mxu0 0
        %484 = vmatpush1.bf16.msra.mxu0 %v478
        %485 = vmatprep.subr.bf16.mxu0 0
        %486 = vmatpush1.bf16.msra.mxu0 0
        %487 = vmatprep.subr.bf16.mxu0 0
        %488 = vmatpush1.bf16.msra.mxu0 0
        %489 = vmatprep.subr.bf16.mxu0 0
        %490 = vmatpush1.bf16.msra.mxu0 0
        %491 = vmatprep.subr.bf16.mxu0 0
        %492 = vmatpush1.bf16.msra.mxu0 0
        %493 = vmatprep.subr.bf16.mxu0 0
        %494 = vmatpush1.bf16.msra.mxu0 0
        %495 = vmatprep.subr.bf16.mxu0 0
        %496 = vmatpush1.bf16.msra.mxu0 0
        %497 = vmatprep.subr.bf16.mxu0 0
        %498 = vmatpush1.bf16.msra.mxu0 0
        %499 = vmatprep.subr.bf16.mxu0 0
        %500 = vmatpush1.bf16.msra.mxu0 0
        %501 = vmatprep.subr.bf16.mxu0 0
        %502 = vmatpush1.bf16.msra.mxu0 0
        %503 = vmatprep.subr.bf16.mxu0 0
        %504 = vmatpush1.bf16.msra.mxu0 0
        %505 = vmatprep.subr.bf16.mxu0 0
        %506 = vmatpush1.bf16.msra.mxu0 0
        %507 = vmatprep.subr.bf16.mxu0 0
        %508 = vmatpush1.bf16.msra.mxu0 0
        %509 = vmatprep.subr.bf16.mxu0 0
        %510 = vmatpush1.bf16.msra.mxu0 0
        %511 = vmatprep.subr.bf16.mxu0 0
        %512 = vmatpush1.bf16.msra.mxu0 0
        %513 = vmatprep.mubr.bf16.mxu0 0
        %514 = vmatmul.mubr.bf16.gmra.mrb[0].mxu0 %v367
        %v515 = vpop.f32.mrb[0].mxu0
        %v516 = vadd.f32 0.0, %v515
        %v517 = vpop.f32.mrb[0].mxu0
        %v518 = vpop.f32.mrb[0].mxu0
        %v519 = vpop.f32.mrb[0].mxu0
        %520 = vdwg.mxu0
        %v521 = vpack.c.bf16 %v404, %v404
        %v522 = vpack.c.bf16 %v460, %v460
        %v523 = vpack.c.bf16 %v516, %v516
        %vm524 = vcmask 130048
        %v526 = vsel %vm524, %v521, 0
        %v529 = vsel %vm524, %v522, 0
        %531 = vmatprep.subr.bf16.mxu0 0
        %532 = vmatpush1.bf16.xpose.msra.mxu0 %v529
        %533 = vmatprep.subr.bf16.mxu0 0
        %534 = vmatpush1.bf16.xpose.msra.mxu0 0
        %535 = vmatprep.subr.bf16.mxu0 0
        %536 = vmatpush1.bf16.xpose.msra.mxu0 0
        %537 = vmatprep.subr.bf16.mxu0 0
        %538 = vmatpush1.bf16.xpose.msra.mxu0 0
        %539 = vmatprep.subr.bf16.mxu0 0
        %540 = vmatpush1.bf16.xpose.msra.mxu0 0
        %541 = vmatprep.subr.bf16.mxu0 0
        %542 = vmatpush1.bf16.xpose.msra.mxu0 0
        %543 = vmatprep.subr.bf16.mxu0 0
        %544 = vmatpush1.bf16.xpose.msra.mxu0 0
        %545 = vmatprep.subr.bf16.mxu0 0
        %546 = vmatpush1.bf16.xpose.msra.mxu0 0
        %547 = vmatprep.subr.bf16.mxu0 0
        %548 = vmatpush1.bf16.xpose.msra.mxu0 0
        %549 = vmatprep.subr.bf16.mxu0 0
        %550 = vmatpush1.bf16.xpose.msra.mxu0 0
        %551 = vmatprep.subr.bf16.mxu0 0
        %552 = vmatpush1.bf16.xpose.msra.mxu0 0
        %553 = vmatprep.subr.bf16.mxu0 0
        %554 = vmatpush1.bf16.xpose.msra.mxu0 0
        %555 = vmatprep.subr.bf16.mxu0 0
        %556 = vmatpush1.bf16.xpose.msra.mxu0 0
        %557 = vmatprep.subr.bf16.mxu0 0
        %558 = vmatpush1.bf16.xpose.msra.mxu0 0
        %559 = vmatprep.subr.bf16.mxu0 0
        %560 = vmatpush1.bf16.xpose.msra.mxu0 0
        %561 = vmatprep.subr.bf16.mxu0 0
        %562 = vmatpush1.bf16.xpose.msra.mxu0 0
        %563 = vmatprep.mubr.bf16.mxu0 0
        %564 = vmatmul.mubr.bf16.gmra.mrb[0].mxu0 %v526
        %v565 = vpop.f32.mrb[0].mxu0
        %v566 = vadd.f32 0.0, %v565
        %v567 = vpop.f32.mrb[0].mxu0
        %v568 = vpop.f32.mrb[0].mxu0
        %v569 = vpop.f32.mrb[0].mxu0
        %570 = vdwg.mxu0
        %vm571 = vcmask 64512
        %v572 = vsel %vm571, %v566, -inf
        %573 = vmax.xlane.f32.xlu0 %v572
        %v574 = vpop.xlane.xlu0 %573
        %v575 = vsub.f32 %v566, %v574
        %v576 = vmul.f32 %v575, 1.442695
        %v577 = vpow.pop %v576
        %v578 = vsel %vm571, %v577, 0.0
        %579 = vadd.xlane.f32.xlu0 %v578
        %v580 = vpop.xlane.xlu0 %579
        %v581 = vrcp.pop %v580
        %v582 = vmul.f32 %v577, %v581
        %v583 = vpack.c.bf16 %v582, %v582
        %v585 = vsel %vm571, %v583, 0
        %vm587 = vcmask 1043456
        %v589 = vsel %vm587, %v523, 0
        %591 = vmatprep.subr.bf16.mxu0 0
        %592 = vmatpush1.bf16.msra.mxu0 %v589
        %593 = vmatprep.subr.bf16.mxu0 0
        %594 = vmatpush1.bf16.msra.mxu0 0
        %595 = vmatprep.subr.bf16.mxu0 0
        %596 = vmatpush1.bf16.msra.mxu0 0
        %597 = vmatprep.subr.bf16.mxu0 0
        %598 = vmatpush1.bf16.msra.mxu0 0
        %599 = vmatprep.subr.bf16.mxu0 0
        %600 = vmatpush1.bf16.msra.mxu0 0
        %601 = vmatprep.subr.bf16.mxu0 0
        %602 = vmatpush1.bf16.msra.mxu0 0
        %603 = vmatprep.subr.bf16.mxu0 0
        %604 = vmatpush1.bf16.msra.mxu0 0
        %605 = vmatprep.subr.bf16.mxu0 0
        %606 = vmatpush1.bf16.msra.mxu0 0
        %607 = vmatprep.subr.bf16.mxu0 0
        %608 = vmatpush1.bf16.msra.mxu0 0
        %609 = vmatprep.subr.bf16.mxu0 0
        %610 = vmatpush1.bf16.msra.mxu0 0
        %611 = vmatprep.subr.bf16.mxu0 0
        %612 = vmatpush1.bf16.msra.mxu0 0
        %613 = vmatprep.subr.bf16.mxu0 0
        %614 = vmatpush1.bf16.msra.mxu0 0
        %615 = vmatprep.subr.bf16.mxu0 0
        %616 = vmatpush1.bf16.msra.mxu0 0
        %617 = vmatprep.subr.bf16.mxu0 0
        %618 = vmatpush1.bf16.msra.mxu0 0
        %619 = vmatprep.subr.bf16.mxu0 0
        %620 = vmatpush1.bf16.msra.mxu0 0
        %621 = vmatprep.subr.bf16.mxu0 0
        %622 = vmatpush1.bf16.msra.mxu0 0
        %623 = vmatprep.mubr.bf16.mxu0 0
        %624 = vmatmul.mubr.bf16.gmra.mrb[0].mxu0 %v585
        %v625 = vpop.f32.mrb[0].mxu0
        %v626 = vadd.f32 0.0, %v625
        %v627 = vpop.f32.mrb[0].mxu0
        %v628 = vpop.f32.mrb[0].mxu0
        %v629 = vpop.f32.mrb[0].mxu0
        %630 = vdwg.mxu0
        %v631 = vpack.c.bf16 %v626, %v626
        %vm632 = vcmask 125952
        %633 = vst.msk [vmem:[#allocation2] sm:$0xf] %vm632, %v631
        %635 = vrot.lane.b32.xlu0 %v521, 112
        %v636 = vpop.permute.xlu0 %635
        %638 = vrot.lane.b32.xlu0 %v522, 112
        %v639 = vpop.permute.xlu0 %638
        %v641 = vsel %vm524, %v636, 0
        %v644 = vsel %vm524, %v639, 0
        %646 = vmatprep.subr.bf16.mxu0 0
        %647 = vmatpush1.bf16.xpose.msra.mxu0 %v644
        %648 = vmatprep.subr.bf16.mxu0 0
        %649 = vmatpush1.bf16.xpose.msra.mxu0 0
        %650 = vmatprep.subr.bf16.mxu0 0
        %651 = vmatpush1.bf16.xpose.msra.mxu0 0
        %652 = vmatprep.subr.bf16.mxu0 0
        %653 = vmatpush1.bf16.xpose.msra.mxu0 0
        %654 = vmatprep.subr.bf16.mxu0 0
        %655 = vmatpush1.bf16.xpose.msra.mxu0 0
        %656 = vmatprep.subr.bf16.mxu0 0
        %657 = vmatpush1.bf16.xpose.msra.mxu0 0
        %658 = vmatprep.subr.bf16.mxu0 0
        %659 = vmatpush1.bf16.xpose.msra.mxu0 0
        %660 = vmatprep.subr.bf16.mxu0 0
        %661 = vmatpush1.bf16.xpose.msra.mxu0 0
        %662 = vmatprep.subr.bf16.mxu0 0
        %663 = vmatpush1.bf16.xpose.msra.mxu0 0
        %664 = vmatprep.subr.bf16.mxu0 0
        %665 = vmatpush1.bf16.xpose.msra.mxu0 0
        %666 = vmatprep.subr.bf16.mxu0 0
        %667 = vmatpush1.bf16.xpose.msra.mxu0 0
        %668 = vmatprep.subr.bf16.mxu0 0
        %669 = vmatpush1.bf16.xpose.msra.mxu0 0
        %670 = vmatprep.subr.bf16.mxu0 0
        %671 = vmatpush1.bf16.xpose.msra.mxu0 0
        %672 = vmatprep.subr.bf16.mxu0 0
        %673 = vmatpush1.bf16.xpose.msra.mxu0 0
        %674 = vmatprep.subr.bf16.mxu0 0
        %675 = vmatpush1.bf16.xpose.msra.mxu0 0
        %676 = vmatprep.subr.bf16.mxu0 0
        %677 = vmatpush1.bf16.xpose.msra.mxu0 0
        %678 = vmatprep.mubr.bf16.mxu0 0
        %679 = vmatmul.mubr.bf16.gmra.mrb[0].mxu0 %v641
        %v680 = vpop.f32.mrb[0].mxu0
        %v681 = vadd.f32 0.0, %v680
        %v682 = vpop.f32.mrb[0].mxu0
        %v683 = vpop.f32.mrb[0].mxu0
        %v684 = vpop.f32.mrb[0].mxu0
        %685 = vdwg.mxu0
        %v686 = vsel %vm571, %v681, -inf
        %687 = vmax.xlane.f32.xlu0 %v686
        %v688 = vpop.xlane.xlu0 %687
        %v689 = vsub.f32 %v681, %v688
        %v690 = vmul.f32 %v689, 1.442695
        %v691 = vpow.pop %v690
        %v692 = vsel %vm571, %v691, 0.0
        %693 = vadd.xlane.f32.xlu0 %v692
        %v694 = vpop.xlane.xlu0 %693
        %v695 = vrcp.pop %v694
        %v696 = vmul.f32 %v691, %v695
        %v697 = vpack.c.bf16 %v696, %v696
        %699 = vrot.lane.b32.xlu0 %v523, 112
        %v700 = vpop.permute.xlu0 %699
        %v702 = vsel %vm571, %v697, 0
        %v705 = vsel %vm587, %v700, 0
        %707 = vmatprep.subr.bf16.mxu0 0
        %708 = vmatpush1.bf16.msra.mxu0 %v705
        %709 = vmatprep.subr.bf16.mxu0 0
        %710 = vmatpush1.bf16.msra.mxu0 0
        %711 = vmatprep.subr.bf16.mxu0 0
        %712 = vmatpush1.bf16.msra.mxu0 0
        %713 = vmatprep.subr.bf16.mxu0 0
        %714 = vmatpush1.bf16.msra.mxu0 0
        %715 = vmatprep.subr.bf16.mxu0 0
        %716 = vmatpush1.bf16.msra.mxu0 0
        %717 = vmatprep.subr.bf16.mxu0 0
        %718 = vmatpush1.bf16.msra.mxu0 0
        %719 = vmatprep.subr.bf16.mxu0 0
        %720 = vmatpush1.bf16.msra.mxu0 0
        %721 = vmatprep.subr.bf16.mxu0 0
        %722 = vmatpush1.bf16.msra.mxu0 0
        %723 = vmatprep.subr.bf16.mxu0 0
        %724 = vmatpush1.bf16.msra.mxu0 0
        %725 = vmatprep.subr.bf16.mxu0 0
        %726 = vmatpush1.bf16.msra.mxu0 0
        %727 = vmatprep.subr.bf16.mxu0 0
        %728 = vmatpush1.bf16.msra.mxu0 0
        %729 = vmatprep.subr.bf16.mxu0 0
        %730 = vmatpush1.bf16.msra.mxu0 0
        %731 = vmatprep.subr.bf16.mxu0 0
        %732 = vmatpush1.bf16.msra.mxu0 0
        %733 = vmatprep.subr.bf16.mxu0 0
        %734 = vmatpush1.bf16.msra.mxu0 0
        %735 = vmatprep.subr.bf16.mxu0 0
        %736 = vmatpush1.bf16.msra.mxu0 0
        %737 = vmatprep.subr.bf16.mxu0 0
        %738 = vmatpush1.bf16.msra.mxu0 0
        %739 = vmatprep.mubr.bf16.mxu0 0
        %740 = vmatmul.mubr.bf16.gmra.mrb[0].mxu0 %v702
        %v741 = vpop.f32.mrb[0].mxu0
        %v742 = vadd.f32 0.0, %v741
        %v743 = vpop.f32.mrb[0].mxu0
        %v744 = vpop.f32.mrb[0].mxu0
        %v745 = vpop.f32.mrb[0].mxu0
        %746 = vdwg.mxu0
        %v747 = vpack.c.bf16 %v742, %v742
        %v749 = vunpack.c.l.b16 %v747
        %v750 = vpack.c.b16 %v749, %v749
        %751 = vrot.lane.b32.xlu0 %v750, 16
        %v752 = vpop.permute.xlu0 %751
        %vm754 = vcmask 257152
        %755 = vst.msk [vmem:[#allocation2] sm:$0xf] %vm754, %v752
        %756 = vrot.lane.b32.xlu0 %v521, 96
        %v757 = vpop.permute.xlu0 %756
        %758 = vrot.lane.b32.xlu0 %v522, 96
        %v759 = vpop.permute.xlu0 %758
        %v761 = vsel %vm524, %v757, 0
        %v764 = vsel %vm524, %v759, 0
        %766 = vmatprep.subr.bf16.mxu0 0
        %767 = vmatpush1.bf16.xpose.msra.mxu0 %v764
        %768 = vmatprep.subr.bf16.mxu0 0
        %769 = vmatpush1.bf16.xpose.msra.mxu0 0
        %770 = vmatprep.subr.bf16.mxu0 0
        %771 = vmatpush1.bf16.xpose.msra.mxu0 0
        %772 = vmatprep.subr.bf16.mxu0 0
        %773 = vmatpush1.bf16.xpose.msra.mxu0 0
        %774 = vmatprep.subr.bf16.mxu0 0
        %775 = vmatpush1.bf16.xpose.msra.mxu0 0
        %776 = vmatprep.subr.bf16.mxu0 0
        %777 = vmatpush1.bf16.xpose.msra.mxu0 0
        %778 = vmatprep.subr.bf16.mxu0 0
        %779 = vmatpush1.bf16.xpose.msra.mxu0 0
        %780 = vmatprep.subr.bf16.mxu0 0
        %781 = vmatpush1.bf16.xpose.msra.mxu0 0
        %782 = vmatprep.subr.bf16.mxu0 0
        %783 = vmatpush1.bf16.xpose.msra.mxu0 0
        %784 = vmatprep.subr.bf16.mxu0 0
        %785 = vmatpush1.bf16.xpose.msra.mxu0 0
        %786 = vmatprep.subr.bf16.mxu0 0
        %787 = vmatpush1.bf16.xpose.msra.mxu0 0
        %788 = vmatprep.subr.bf16.mxu0 0
        %789 = vmatpush1.bf16.xpose.msra.mxu0 0
        %790 = vmatprep.subr.bf16.mxu0 0
        %791 = vmatpush1.bf16.xpose.msra.mxu0 0
        %792 = vmatprep.subr.bf16.mxu0 0
        %793 = vmatpush1.bf16.xpose.msra.mxu0 0
        %794 = vmatprep.subr.bf16.mxu0 0
        %795 = vmatpush1.bf16.xpose.msra.mxu0 0
        %796 = vmatprep.subr.bf16.mxu0 0
        %797 = vmatpush1.bf16.xpose.msra.mxu0 0
        %798 = vmatprep.mubr.bf16.mxu0 0
        %799 = vmatmul.mubr.bf16.gmra.mrb[0].mxu0 %v761
        %v800 = vpop.f32.mrb[0].mxu0
        %v801 = vadd.f32 0.0, %v800
        %v802 = vpop.f32.mrb[0].mxu0
        %v803 = vpop.f32.mrb[0].mxu0
        %v804 = vpop.f32.mrb[0].mxu0
        %805 = vdwg.mxu0
        %v806 = vsel %vm571, %v801, -inf
        %807 = vmax.xlane.f32.xlu0 %v806
        %v808 = vpop.xlane.xlu0 %807
        %v809 = vsub.f32 %v801, %v808
        %v810 = vmul.f32 %v809, 1.442695
        %v811 = vpow.pop %v810
        %v812 = vsel %vm571, %v811, 0.0
        %813 = vadd.xlane.f32.xlu0 %v812
        %v814 = vpop.xlane.xlu0 %813
        %v815 = vrcp.pop %v814
        %v816 = vmul.f32 %v811, %v815
        %v817 = vpack.c.bf16 %v816, %v816
        %818 = vrot.lane.b32.xlu0 %v523, 96
        %v819 = vpop.permute.xlu0 %818
        %v821 = vsel %vm571, %v817, 0
        %v824 = vsel %vm587, %v819, 0
        %826 = vmatprep.subr.bf16.mxu0 0
        %827 = vmatpush1.bf16.msra.mxu0 %v824
        %828 = vmatprep.subr.bf16.mxu0 0
        %829 = vmatpush1.bf16.msra.mxu0 0
        %830 = vmatprep.subr.bf16.mxu0 0
        %831 = vmatpush1.bf16.msra.mxu0 0
        %832 = vmatprep.subr.bf16.mxu0 0
        %833 = vmatpush1.bf16.msra.mxu0 0
        %834 = vmatprep.subr.bf16.mxu0 0
        %835 = vmatpush1.bf16.msra.mxu0 0
        %836 = vmatprep.subr.bf16.mxu0 0
        %837 = vmatpush1.bf16.msra.mxu0 0
        %838 = vmatprep.subr.bf16.mxu0 0
        %839 = vmatpush1.bf16.msra.mxu0 0
        %840 = vmatprep.subr.bf16.mxu0 0
        %841 = vmatpush1.bf16.msra.mxu0 0
        %842 = vmatprep.subr.bf16.mxu0 0
        %843 = vmatpush1.bf16.msra.mxu0 0
        %844 = vmatprep.subr.bf16.mxu0 0
        %845 = vmatpush1.bf16.msra.mxu0 0
        %846 = vmatprep.subr.bf16.mxu0 0
        %847 = vmatpush1.bf16.msra.mxu0 0
        %848 = vmatprep.subr.bf16.mxu0 0
        %849 = vmatpush1.bf16.msra.mxu0 0
        %850 = vmatprep.subr.bf16.mxu0 0
        %851 = vmatpush1.bf16.msra.mxu0 0
        %852 = vmatprep.subr.bf16.mxu0 0
        %853 = vmatpush1.bf16.msra.mxu0 0
        %854 = vmatprep.subr.bf16.mxu0 0
        %855 = vmatpush1.bf16.msra.mxu0 0
        %856 = vmatprep.subr.bf16.mxu0 0
        %857 = vmatpush1.bf16.msra.mxu0 0
        %858 = vmatprep.mubr.bf16.mxu0 0
        %859 = vmatmul.mubr.bf16.gmra.mrb[0].mxu0 %v821
        %v860 = vpop.f32.mrb[0].mxu0
        %v861 = vadd.f32 0.0, %v860
        %v862 = vpop.f32.mrb[0].mxu0
        %v863 = vpop.f32.mrb[0].mxu0
        %v864 = vpop.f32.mrb[0].mxu0
        %865 = vdwg.mxu0
        %v866 = vpack.c.bf16 %v861, %v861
        %v868 = vunpack.c.l.b16 %v866
        %v869 = vpack.c.b16 %v868, %v868
        %870 = vrot.lane.b32.xlu0 %v869, 32
        %v871 = vpop.permute.xlu0 %870
        %vm873 = vcmask 388352
        %874 = vst.msk [vmem:[#allocation2] sm:$0xf] %vm873, %v871
        %875 = vrot.lane.b32.xlu0 %v521, 80
        %v876 = vpop.permute.xlu0 %875
        %877 = vrot.lane.b32.xlu0 %v522, 80
        %v878 = vpop.permute.xlu0 %877
        %v880 = vsel %vm524, %v876, 0
        %v883 = vsel %vm524, %v878, 0
        %885 = vmatprep.subr.bf16.mxu0 0
        %886 = vmatpush1.bf16.xpose.msra.mxu0 %v883
        %887 = vmatprep.subr.bf16.mxu0 0
        %888 = vmatpush1.bf16.xpose.msra.mxu0 0
        %889 = vmatprep.subr.bf16.mxu0 0
        %890 = vmatpush1.bf16.xpose.msra.mxu0 0
        %891 = vmatprep.subr.bf16.mxu0 0
        %892 = vmatpush1.bf16.xpose.msra.mxu0 0
        %893 = vmatprep.subr.bf16.mxu0 0
        %894 = vmatpush1.bf16.xpose.msra.mxu0 0
        %895 = vmatprep.subr.bf16.mxu0 0
        %896 = vmatpush1.bf16.xpose.msra.mxu0 0
        %897 = vmatprep.subr.bf16.mxu0 0
        %898 = vmatpush1.bf16.xpose.msra.mxu0 0
        %899 = vmatprep.subr.bf16.mxu0 0
        %900 = vmatpush1.bf16.xpose.msra.mxu0 0
        %901 = vmatprep.subr.bf16.mxu0 0
        %902 = vmatpush1.bf16.xpose.msra.mxu0 0
        %903 = vmatprep.subr.bf16.mxu0 0
        %904 = vmatpush1.bf16.xpose.msra.mxu0 0
        %905 = vmatprep.subr.bf16.mxu0 0
        %906 = vmatpush1.bf16.xpose.msra.mxu0 0
        %907 = vmatprep.subr.bf16.mxu0 0
        %908 = vmatpush1.bf16.xpose.msra.mxu0 0
        %909 = vmatprep.subr.bf16.mxu0 0
        %910 = vmatpush1.bf16.xpose.msra.mxu0 0
        %911 = vmatprep.subr.bf16.mxu0 0
        %912 = vmatpush1.bf16.xpose.msra.mxu0 0
        %913 = vmatprep.subr.bf16.mxu0 0
        %914 = vmatpush1.bf16.xpose.msra.mxu0 0
        %915 = vmatprep.subr.bf16.mxu0 0
        %916 = vmatpush1.bf16.xpose.msra.mxu0 0
        %917 = vmatprep.mubr.bf16.mxu0 0
        %918 = vmatmul.mubr.bf16.gmra.mrb[0].mxu0 %v880
        %v919 = vpop.f32.mrb[0].mxu0
        %v920 = vadd.f32 0.0, %v919
        %v921 = vpop.f32.mrb[0].mxu0
        %v922 = vpop.f32.mrb[0].mxu0
        %v923 = vpop.f32.mrb[0].mxu0
        %924 = vdwg.mxu0
        %v925 = vsel %vm571, %v920, -inf
        %926 = vmax.xlane.f32.xlu0 %v925
        %v927 = vpop.xlane.xlu0 %926
        %v928 = vsub.f32 %v920, %v927
        %v929 = vmul.f32 %v928, 1.442695
        %v930 = vpow.pop %v929
        %v931 = vsel %vm571, %v930, 0.0
        %932 = vadd.xlane.f32.xlu0 %v931
        %v933 = vpop.xlane.xlu0 %932
        %v934 = vrcp.pop %v933
        %v935 = vmul.f32 %v930, %v934
        %v936 = vpack.c.bf16 %v935, %v935
        %937 = vrot.lane.b32.xlu0 %v523, 80
        %v938 = vpop.permute.xlu0 %937
        %v940 = vsel %vm571, %v936, 0
        %v943 = vsel %vm587, %v938, 0
        %945 = vmatprep.subr.bf16.mxu0 0
        %946 = vmatpush1.bf16.msra.mxu0 %v943
        %947 = vmatprep.subr.bf16.mxu0 0
        %948 = vmatpush1.bf16.msra.mxu0 0
        %949 = vmatprep.subr.bf16.mxu0 0
        %950 = vmatpush1.bf16.msra.mxu0 0
        %951 = vmatprep.subr.bf16.mxu0 0
        %952 = vmatpush1.bf16.msra.mxu0 0
        %953 = vmatprep.subr.bf16.mxu0 0
        %954 = vmatpush1.bf16.msra.mxu0 0
        %955 = vmatprep.subr.bf16.mxu0 0
        %956 = vmatpush1.bf16.msra.mxu0 0
        %957 = vmatprep.subr.bf16.mxu0 0
        %958 = vmatpush1.bf16.msra.mxu0 0
        %959 = vmatprep.subr.bf16.mxu0 0
        %960 = vmatpush1.bf16.msra.mxu0 0
        %961 = vmatprep.subr.bf16.mxu0 0
        %962 = vmatpush1.bf16.msra.mxu0 0
        %963 = vmatprep.subr.bf16.mxu0 0
        %964 = vmatpush1.bf16.msra.mxu0 0
        %965 = vmatprep.subr.bf16.mxu0 0
        %966 = vmatpush1.bf16.msra.mxu0 0
        %967 = vmatprep.subr.bf16.mxu0 0
        %968 = vmatpush1.bf16.msra.mxu0 0
        %969 = vmatprep.subr.bf16.mxu0 0
        %970 = vmatpush1.bf16.msra.mxu0 0
        %971 = vmatprep.subr.bf16.mxu0 0
        %972 = vmatpush1.bf16.msra.mxu0 0
        %973 = vmatprep.subr.bf16.mxu0 0
        %974 = vmatpush1.bf16.msra.mxu0 0
        %975 = vmatprep.subr.bf16.mxu0 0
        %976 = vmatpush1.bf16.msra.mxu0 0
        %977 = vmatprep.mubr.bf16.mxu0 0
        %978 = vmatmul.mubr.bf16.gmra.mrb[0].mxu0 %v940
        %v979 = vpop.f32.mrb[0].mxu0
        %v980 = vadd.f32 0.0, %v979
        %v981 = vpop.f32.mrb[0].mxu0
        %v982 = vpop.f32.mrb[0].mxu0
        %v983 = vpop.f32.mrb[0].mxu0
        %984 = vdwg.mxu0
        %v985 = vpack.c.bf16 %v980, %v980
        %v987 = vunpack.c.l.b16 %v985
        %v988 = vpack.c.b16 %v987, %v987
        %989 = vrot.lane.b32.xlu0 %v988, 48
        %v990 = vpop.permute.xlu0 %989
        %vm992 = vcmask 519552
        %993 = vst.msk [vmem:[#allocation2] sm:$0xf] %vm992, %v990
        %v994 = vld [vmem:[#allocation2] sm:$0xf]
        %v995 = vld [vmem:[%s6] sm:$0xf]
        %v996 = vld [vmem:[%s6 + $0x4] sm:$0xf]
        %v997 = vld [vmem:[%s6 + $0x8] sm:$0xf]
        %v998 = vld [vmem:[%s6 + $0xc] sm:$0xf]
        %v999 = vld [vmem:[%s6 + $0x10] sm:$0xf]
        %v1000 = vld [vmem:[%s6 + $0x14] sm:$0xf]
        %v1001 = vld [vmem:[%s6 + $0x18] sm:$0xf]
        %v1002 = vld [vmem:[%s6 + $0x1c] sm:$0xf]
        %v1003 = vld [vmem:[%s7] sm:$0x1]
        %v1005 = vlaneseq
        %v1006 = vshrl.u32 %v1005, 7
        %v1007 = vsub.s32 0, %v1006
        %v1008 = vrot.slane %v1003, %v1007
        %v1018 = vunpack.c.l.b16 %v995
        %v1019 = vunpack.c.l.b16 %v996
        %v1020 = vunpack.c.l.b16 %v997
        %v1021 = vunpack.c.l.b16 %v998
        %v1022 = vunpack.c.l.b16 %v999
        %v1023 = vunpack.c.l.b16 %v1000
        %v1024 = vunpack.c.l.b16 %v1001
        %v1025 = vunpack.c.l.b16 %v1002
        %v1026 = vpack.c.b16 %v1019, %v1018
        %v1027 = vpack.c.b16 %v1021, %v1020
        %v1028 = vpack.c.b16 %v1023, %v1022
        %v1029 = vpack.c.b16 %v1025, %v1024
        %vm1034 = vcmask 523264
        %v1036 = vsel %vm1034, %v994, 0
        %1038 = vmatprep.subr.bf16.mxu0 0
        %1039 = vmatpush1.bf16.msra.mxu0 %v1026
        %1040 = vmatprep.subr.bf16.mxu0 0
        %1041 = vmatpush1.bf16.msra.mxu0 %v1027
        %1042 = vmatprep.subr.bf16.mxu0 0
        %1043 = vmatpush1.bf16.msra.mxu0 %v1028
        %1044 = vmatprep.subr.bf16.mxu0 0
        %1045 = vmatpush1.bf16.msra.mxu0 %v1029
        %1046 = vmatprep.subr.bf16.mxu0 0
        %1047 = vmatpush1.bf16.msra.mxu0 0
        %1048 = vmatprep.subr.bf16.mxu0 0
        %1049 = vmatpush1.bf16.msra.mxu0 0
        %1050 = vmatprep.subr.bf16.mxu0 0
        %1051 = vmatpush1.bf16.msra.mxu0 0
        %1052 = vmatprep.subr.bf16.mxu0 0
        %1053 = vmatpush1.bf16.msra.mxu0 0
        %1054 = vmatprep.subr.bf16.mxu0 0
        %1055 = vmatpush1.bf16.msra.mxu0 0
        %1056 = vmatprep.subr.bf16.mxu0 0
        %1057 = vmatpush1.bf16.msra.mxu0 0
        %1058 = vmatprep.subr.bf16.mxu0 0
        %1059 = vmatpush1.bf16.msra.mxu0 0
        %1060 = vmatprep.subr.bf16.mxu0 0
        %1061 = vmatpush1.bf16.msra.mxu0 0
        %1062 = vmatprep.subr.bf16.mxu0 0
        %1063 = vmatpush1.bf16.msra.mxu0 0
        %1064 = vmatprep.subr.bf16.mxu0 0
        %1065 = vmatpush1.bf16.msra.mxu0 0
        %1066 = vmatprep.subr.bf16.mxu0 0
        %1067 = vmatpush1.bf16.msra.mxu0 0
        %1068 = vmatprep.subr.bf16.mxu0 0
        %1069 = vmatpush1.bf16.msra.mxu0 0
        %1070 = vmatprep.mubr.bf16.mxu0 0
        %1071 = vmatmul.mubr.bf16.gmra.mrb[0].mxu0 %v1036
        %v1072 = vpop.f32.mrb[0].mxu0
        %v1073 = vadd.f32 %v1008, %v1072
        %v1074 = vpop.f32.mrb[0].mxu0
        %v1075 = vpop.f32.mrb[0].mxu0
        %v1076 = vpop.f32.mrb[0].mxu0
        %1077 = vdwg.mxu0
        %1078 = vst.msk [vmem:[%s311] sm:$0xff] %vm318, %v1073
        %s1079 = sand.u32 %s204, 1
        %s1080 = scalar_lea.sflag [#allocation5], %s1079
        %s1081 = sand.u32 %s204, 1
        %s1082 = smul.addr %s1081, 8
        %s1083 = scalar_lea.vmem [#allocation6], %s1082
        // Predicated region
        $region57: #{tpu_custom_call.1} parent=51 // pred_check
          %p1084 = pneg %p214
        $region58: #{tpu_custom_call.1} parent=51 // pred_check_branch
          %1086 = sbr.rel (%p1084) target = $region60
        $region59: #{tpu_custom_call.1} parent=51 // pred_region
          %s1088 = ssub.s32 128, 128
          %1089 = vsyncadd %s1080, %s1088
          %s1090 = smul.addr %s23, 128
          %s1091 = scalar_lea.hbm %s8, %s1090
          %s1093 = sshll.u32 %s1083, 4
          %s1094 = int_to_ptr.vmem [resolvable:$true] %s1093
          %1096 = dma.vmem_to_hbm [thread:$0]  %s1094, 128, %s1091, %s1080
        $region60: #{tpu_custom_call.1} parent=51 // pred_fallthru
          _
      $region52: #{tpu_custom_call.1} parent=5 // pred_fallthru
        _
      %p1097 = scmp.le.s32.totalorder 2, %s18
      // Predicated region
      $region61: #{tpu_custom_call.1} parent=5 // pred_check
        %p1098 = pneg %p1097
      $region62: #{tpu_custom_call.1} parent=5 // pred_check_branch
        %1100 = sbr.rel (%p1098) target = $region64
      $region63: #{tpu_custom_call.1} parent=5 // pred_region
        %s1101 = ssub.s32 %s18, 2
        // Predicated region
        $region65: #{tpu_custom_call.1} parent=63 // pred_check
          %p1102 = pneg %p220
        $region66: #{tpu_custom_call.1} parent=63 // pred_check_branch
          %1104 = sbr.rel (%p1102) target = $region68
        $region67: #{tpu_custom_call.1} parent=63 // pred_region
          %s1105 = sand.u32 %s205, 1
          %s1106 = scalar_lea.sflag [#allocation5], %s1105
          %s1107 = sand.u32 %s205, 1
          %s1108 = smul.addr %s1107, 8
          %s1109 = scalar_lea.vmem [#allocation6], %s1108
          %1110 = dma.done %s1106, 128
        $region68: #{tpu_custom_call.1} parent=63 // pred_fallthru
          _
      $region64: #{tpu_custom_call.1} parent=5 // pred_fallthru
        _
    $region6: #{tpu_custom_call.1} parent=1 // loop_footer
      %s22 = sadd.s32 1, %s18
    $region7: #{tpu_custom_call.1} parent=1 // loop_footer_branch
      %17 = sbr.rel target = $region3
    $region8: #{tpu_custom_call.1} parent=1 // loop_exit
      _
    %1111 = vsyncpa [#allocation4], 1
    %s1112 = scalar_lea.sflag [#allocation4], 1
    %1113 = vsyncpa %s1112, 1
    %1114 = vsyncpa [#allocation5], 1
    %s1115 = scalar_lea.sflag [#allocation5], 1
    %1116 = vsyncpa %s1115, 1

</llo_original>
